<compile_context>
chip_gen: v5e
topology: v5e:2x2
jax: 0.10.0
libtpu: 0.0.40
codegen_flags: <defaults>
</compile_context>

<pallas_src>
import functools

import jax
import jax.numpy as jnp
from jax.experimental import pallas as pl
from jax.experimental.pallas import tpu as pltpu


def _round_up(x: int, m: int) -> int:
    return ((x + m - 1) // m) * m


def _pick_tile(dim_rounded: int, align: int, cap: int) -> int:
    """Largest aligned tile <= cap.  Prefers exact divisors of dim_rounded
    (zero padded compute / DMA); falls back to the cap with padding only when
    the best divisor is small and the padding waste is modest."""
    cap = max(align, (cap // align) * align)
    if dim_rounded <= cap:
        return dim_rounded
    best_div = align
    t = align
    while t <= cap:
        if dim_rounded % t == 0:
            best_div = t
        t += align
    padded = _round_up(dim_rounded, cap)
    waste = (padded - dim_rounded) / padded
    if best_div * 2 >= cap or waste > 0.10:
        return best_div
    return cap


def _apply_activation(y, activate):
    if activate == "relu":
        return jnp.maximum(y, 0.0)
    if activate == "sigmoid":
        return jax.nn.sigmoid(y)
    if activate == "tanh":
        return jnp.tanh(y)
    return y


def _fcnet_kernel(s_ref, x_ref, w_ref, b_ref, o_ref, *scratch, activate):
    # s_ref: (1,1) f32 in SMEM (weight_norm scalar g/||V||_F)
    # x_ref: (tb,tk)   w_ref: (tk,tn)   b_ref: (1,tn) f32   o_ref: (tb,tn)
    # scratch: optional (tb,tn) f32 accumulator (omitted when o_ref is f32)
    acc_ref = scratch[0] if scratch else o_ref
    k = pl.program_id(2)

    @pl.when(k == 0)
    def _():
        acc_ref[...] = jnp.zeros_like(acc_ref)

    acc_ref[...] += jnp.dot(
        x_ref[...], w_ref[...], preferred_element_type=jnp.float32
    )

    @pl.when(k == pl.num_programs(2) - 1)
    def _():
        s = s_ref[0, 0]
        # s*(x @ V^T) + b == x @ (g*V/||V||)^T + b ; activation on f32 (VPU/EUP,
        # off the MXU/DMA critical path).
        y = acc_ref[...] * s + b_ref[...]
        y = _apply_activation(y, activate)
        o_ref[...] = y.astype(o_ref.dtype)


def fcnet_forward(x, v, g, b, *, activate=None, drop=0.0,
                  cast_to_bf16=None, tb=None, tn=None, tk=None,
                  min_pallas_elems=1 << 20):
    """FCNet forward pass.

    x : [B, in_size]          input
    v : [out_size, in_size]   weight_norm direction parameter (PyTorch layout)
    g : scalar                weight_norm magnitude (dim=None -> scalar)
    b : [out_size]            bias
    """
    assert drop == 0.0, "dropout not implemented (drop=0.0 in this module)"
    activate = activate.lower() if activate is not None else None
    assert activate in (None, "relu", "sigmoid", "tanh")

    B, in_size = x.shape
    out_size, in_size_w = v.shape
    assert in_size_w == in_size

    f32 = jnp.float32
    # weight_norm (dim=None): fold the scalar scale into the kernel epilogue so
    # the scaled weight matrix is never written to HBM.
    s = (jnp.asarray(g, f32) / jnp.linalg.norm(v.astype(f32))).reshape(1, 1)

    out_dtype = x.dtype
    if cast_to_bf16 is None:
        cast_to_bf16 = jnp.dtype(x.dtype) == jnp.dtype(jnp.float32)
    compute_dtype = jnp.bfloat16 if cast_to_bf16 else x.dtype

    # ---- tiny problems: XLA's fused dot beats pad + pallas_call overhead ----
    if B * in_size * out_size < min_pallas_elems:
        y = (x.astype(f32) @ v.astype(f32).T) * s[0, 0] + b.astype(f32)
        return _apply_activation(y, activate).astype(out_dtype)

    x_c = x.astype(compute_dtype)
    w_c = v.T.astype(compute_dtype)                  # [in, out], fused T+cast
    b2 = b.reshape(1, out_size).astype(f32)

    # ---- tile selection (sized from physical VMEM; lane/sublane aligned) ----
    try:
        vmem_cap = int(pltpu.get_tpu_info().vmem_capacity_bytes)
    except Exception:
        vmem_cap = 64 * 1024 * 1024      # conservative: v7x per-TensorCore VMEM
    if vmem_cap >= 96 * 1024 * 1024:     # v5e / v6e (128 MiB)
        tb_cap, tn_cap, tk_cap = 512, 2048, 1024
    else:                                # v7x (64 MiB per core)
        tb_cap, tn_cap, tk_cap = 512, 1024, 1024

    B_r = _round_up(B, 16)
    N_r = _round_up(out_size, 128)
    K_r = _round_up(in_size, 128)

    tb = _pick_tile(B_r, 16, tb_cap) if tb is None else _round_up(min(tb, B_r), 16)
    tn = _pick_tile(N_r, 128, tn_cap) if tn is None else _round_up(min(tn, N_r), 128)
    tk = _pick_tile(K_r, 128, tk_cap) if tk is None else _round_up(min(tk, K_r), 128)

    # v7x has 2 TensorCores: keep >= 2 blocks along a "parallel" axis.
    if tb >= B_r and tn >= N_r and tn > 128:
        tn = _pick_tile(N_r, 128, max(128, _round_up(tn // 2, 128)))

    in_b = jnp.dtype(compute_dtype).itemsize
    out_b = jnp.dtype(out_dtype).itemsize
    use_acc_scratch = jnp.dtype(out_dtype) != jnp.dtype(jnp.float32)

    def footprint(tb_, tn_, tk_):
        f = (2 * (tb_ * tk_ * in_b + tk_ * tn_ * in_b + tn_ * 4)
             + 2 * tb_ * tn_ * out_b)
        if use_acc_scratch:
            f += tb_ * tn_ * 4
        return f

    budget = int(0.45 * vmem_cap)        # leave headroom for compiler scratch
    while footprint(tb, tn, tk) > budget:
        if tk >= max(tn, 256):
            tk = max(128, _round_up(tk // 2, 128))
        elif tn >= 256:
            tn = max(128, _round_up(tn // 2, 128))
        elif tb > 16:
            tb = max(16, _round_up(tb // 2, 16))
        else:
            break

    # ---- pad to tile multiples (zero K-padding contributes nothing) ----
    B_p = _round_up(B, tb)
    N_p = _round_up(out_size, tn)
    K_p = _round_up(in_size, tk)
    if (B_p, K_p) != (B, in_size):
        x_c = jnp.pad(x_c, ((0, B_p - B), (0, K_p - in_size)))
    if (K_p, N_p) != (in_size, out_size):
        w_c = jnp.pad(w_c, ((0, K_p - in_size), (0, N_p - out_size)))
    if N_p != out_size:
        b2 = jnp.pad(b2, ((0, 0), (0, N_p - out_size)))

    grid = (B_p // tb, N_p // tn, K_p // tk)

    vmem_needed = footprint(tb, tn, tk)
    vmem_limit = int(min(0.9 * vmem_cap,
                         max(32 * 1024 * 1024, 2 * vmem_needed)))
    vmem_limit = int(min(max(vmem_limit, vmem_needed + (2 << 20)),
                         int(0.95 * vmem_cap)))

    flops = 2 * B * in_size * out_size
    transcendentals = B * out_size if activate in ("sigmoid", "tanh") else 0
    bytes_accessed = (B_p * K_p * in_b + K_p * N_p * in_b
                      + B_p * N_p * out_b + N_p * 4)
    cost = pl.CostEstimate(flops=flops, transcendentals=transcendentals,
                           bytes_accessed=bytes_accessed)

    scratch_shapes = ([pltpu.VMEM((tb, tn), jnp.float32)]
                      if use_acc_scratch else [])
    kernel = functools.partial(_fcnet_kernel, activate=activate)

    out_padded = pl.pallas_call(
        kernel,
        out_shape=jax.ShapeDtypeStruct((B_p, N_p), out_dtype),
        grid_spec=pltpu.PrefetchScalarGridSpec(
            num_scalar_prefetch=0,
            grid=grid,
            in_specs=[
                pl.BlockSpec(memory_space=pltpu.MemorySpace.SMEM),  # s (1,1)
                pl.BlockSpec((tb, tk), lambda i, j, k: (i, k)),     # x tile
                pl.BlockSpec((tk, tn), lambda i, j, k: (k, j)),     # V^T tile
                pl.BlockSpec((1, tn), lambda i, j, k: (0, j)),      # bias tile
            ],
            out_specs=pl.BlockSpec((tb, tn), lambda i, j, k: (i, j)),
            scratch_shapes=scratch_shapes,
        ),
        compiler_params=pltpu.CompilerParams(
            dimension_semantics=("parallel", "parallel", "arbitrary"),
            vmem_limit_bytes=vmem_limit,
        ),
        cost_estimate=cost,
    )(s, x_c, w_c, b2)

    return out_padded[:B, :out_size]


def fcnet_reference(x, v, g, b, *, activate=None):
    w_eff = g * v / jnp.linalg.norm(v)
    return _apply_activation(x @ w_eff.T + b, activate)


if __name__ == "__main__":
    key = jax.random.PRNGKey(0)

    def make_params(k, batch, in_size, out_size):
        kx, kv, kg, kb = jax.random.split(k, 4)
        x = jax.random.normal(kx, (batch, in_size), dtype=jnp.float32)
        v = jax.random.normal(kv, (out_size, in_size), dtype=jnp.float32) * 0.1
        g = jax.random.normal(kg, (), dtype=jnp.float32) + 2.0   # scalar magnitude
        b = jax.random.normal(kb, (out_size,), dtype=jnp.float32) * 0.05
        return x, v, g, b

    k1, k2, k3 = jax.random.split(key, 3)

    # 1) Tiny layer -> XLA fallback path (pallas fixed cost would dominate).
    x, v, g, b = make_params(k1, 8, 32, 64)
    out = jax.block_until_ready(fcnet_forward(x, v, g, b, activate="relu"))
    ref = fcnet_reference(x, v, g, b, activate="relu")
    assert out.shape == ref.shape
    assert jnp.allclose(out, ref, atol=1e-4, rtol=1e-4), "fallback mismatch"

    # 2) Unaligned shapes, f32 operands -> Pallas kernel with padding.
    x, v, g, b = make_params(k2, 200, 300, 450)
    out = jax.block_until_ready(
        fcnet_forward(x, v, g, b, activate="sigmoid", cast_to_bf16=False))
    ref = fcnet_reference(x, v, g, b, activate="sigmoid")
    assert out.shape == ref.shape
    assert jnp.allclose(out, ref, atol=1e-4, rtol=1e-4), "f32 pallas mismatch"

    # 3) Aligned shapes, default bf16 operands (f32 accumulation) -> Pallas.
    x, v, g, b = make_params(k3, 256, 384, 512)
    out = jax.block_until_ready(fcnet_forward(x, v, g, b, activate="tanh"))
    ref = fcnet_reference(x, v, g, b, activate="tanh")
    assert out.shape == ref.shape
    assert jnp.allclose(out, ref, atol=3e-2, rtol=3e-2), "bf16 pallas mismatch"

    print("KERNEL_OK")
</pallas_src>

<mosaic_0001>
module attributes {stable_mosaic.version = 11 : i64} {
  func.func @_fcnet_kernel(%arg0: i32, %arg1: i32, %arg2: i32, %arg3: memref<1x1xf32, #tpu.memory_space<smem>>, %arg4: memref<208x384xf32, #tpu.memory_space<vmem>>, %arg5: memref<384x256xf32, #tpu.memory_space<vmem>>, %arg6: memref<1x256xf32, #tpu.memory_space<vmem>>, %arg7: memref<208x256xf32, #tpu.memory_space<vmem>>) attributes {dimension_semantics = [#tpu.dimension_semantics<parallel>, #tpu.dimension_semantics<parallel>, #tpu.dimension_semantics<arbitrary>], iteration_bounds = array<i64: 1, 2, 1>, scalar_prefetch = 0 : i64, scratch_operands = 0 : i64, tpu.core_type = #tpu.core_type<tc>, window_params = [{transform_indices = @transform_0, window_bounds = array<i64: 1, 1>}, {transform_indices = @transform_1, window_bounds = array<i64: 208, 384>}, {transform_indices = @transform_2, window_bounds = array<i64: 384, 256>}, {transform_indices = @transform_3, window_bounds = array<i64: 1, 256>}, {transform_indices = @transform_4, window_bounds = array<i64: 208, 256>}]} {
    %c0_i32 = arith.constant 0 : i32
    %0 = arith.cmpi eq, %arg2, %c0_i32 : i32
    %1 = arith.extui %0 : i1 to i32
    %c0_i32_0 = arith.constant 0 : i32
    %2 = arith.cmpi ne, %1, %c0_i32_0 : i32
    scf.if %2 {
      %cst_10 = arith.constant 0.000000e+00 : f32
      %12 = vector.broadcast %cst_10 : f32 to vector<208x256xf32>
      %c0_11 = arith.constant 0 : index
      %c0_12 = arith.constant 0 : index
      %13 = vector.load %arg7[%c0_11, %c0_12] : memref<208x256xf32, #tpu.memory_space<vmem>>, vector<208x256xf32>
      tpu.vector_store %arg7[%c0_11, %c0_12], %12 {strides = array<i32>} : memref<208x256xf32, #tpu.memory_space<vmem>>, vector<208x256xf32>,
    } else {
    }
    %c0 = arith.constant 0 : index
    %c0_1 = arith.constant 0 : index
    %3 = vector.load %arg7[%c0, %c0_1] : memref<208x256xf32, #tpu.memory_space<vmem>>, vector<208x256xf32>
    %c0_2 = arith.constant 0 : index
    %c0_3 = arith.constant 0 : index
    %4 = vector.load %arg4[%c0_2, %c0_3] : memref<208x384xf32, #tpu.memory_space<vmem>>, vector<208x384xf32>
    %c0_4 = arith.constant 0 : index
    %c0_5 = arith.constant 0 : index
    %5 = vector.load %arg5[%c0_4, %c0_5] : memref<384x256xf32, #tpu.memory_space<vmem>>, vector<384x256xf32>
    %cst = arith.constant dense<0.000000e+00> : vector<208x256xf32>
    %6 = tpu.matmul %4, %5, %cst {dimension_numbers = #tpu.dot_dimension_numbers<[1], [0], [0], [1], [0, 0, 1, 1], [], []>} : vector<208x384xf32>, vector<384x256xf32>, vector<208x256xf32> -> vector<208x256xf32>
    %7 = arith.addf %3, %6 : vector<208x256xf32>
    %c0_6 = arith.constant 0 : index
    %c0_7 = arith.constant 0 : index
    %8 = vector.load %arg7[%c0_6, %c0_7] : memref<208x256xf32, #tpu.memory_space<vmem>>, vector<208x256xf32>
    tpu.vector_store %arg7[%c0_6, %c0_7], %7 {strides = array<i32>} : memref<208x256xf32, #tpu.memory_space<vmem>>, vector<208x256xf32>,
    %c0_i32_8 = arith.constant 0 : i32
    %9 = arith.cmpi eq, %arg2, %c0_i32_8 : i32
    %10 = arith.extui %9 : i1 to i32
    %c0_i32_9 = arith.constant 0 : i32
    %11 = arith.cmpi ne, %10, %c0_i32_9 : i32
    scf.if %11 {
      %c0_10 = arith.constant 0 : index
      %c0_11 = arith.constant 0 : index
      %12 = memref.load %arg3[%c0_10, %c0_11] : memref<1x1xf32, #tpu.memory_space<smem>>
      %c0_12 = arith.constant 0 : index
      %c0_13 = arith.constant 0 : index
      %13 = vector.load %arg7[%c0_12, %c0_13] : memref<208x256xf32, #tpu.memory_space<vmem>>, vector<208x256xf32>
      %14 = vector.broadcast %12 : f32 to vector<208x256xf32>
      %15 = arith.mulf %13, %14 : vector<208x256xf32>
      %c0_14 = arith.constant 0 : index
      %c0_15 = arith.constant 0 : index
      %16 = vector.load %arg6[%c0_14, %c0_15] : memref<1x256xf32, #tpu.memory_space<vmem>>, vector<1x256xf32>
      %17 = vector.broadcast %16 : vector<1x256xf32> to vector<208x256xf32>
      %18 = arith.addf %15, %17 : vector<208x256xf32>
      %19 = arith.negf %18 : vector<208x256xf32>
      %20 = math.exp %19 : vector<208x256xf32>
      %cst_16 = arith.constant 1.000000e+00 : f32
      %21 = vector.broadcast %cst_16 : f32 to vector<208x256xf32>
      %22 = arith.addf %21, %20 : vector<208x256xf32>
      %23 = arith.divf %21, %22 : vector<208x256xf32>
      %c0_17 = arith.constant 0 : index
      %c0_18 = arith.constant 0 : index
      %24 = vector.load %arg7[%c0_17, %c0_18] : memref<208x256xf32, #tpu.memory_space<vmem>>, vector<208x256xf32>
      tpu.vector_store %arg7[%c0_17, %c0_18], %23 {strides = array<i32>} : memref<208x256xf32, #tpu.memory_space<vmem>>, vector<208x256xf32>,
    } else {
    }
    return
  }
  func.func @transform_0(%arg0: i32, %arg1: i32, %arg2: i32) -> (i32, i32) {
    %c0_i32 = arith.constant 0 : i32
    %c0_i32_0 = arith.constant 0 : i32
    %c0_i32_1 = arith.constant 0 : i32
    return %c0_i32, %c0_i32_0 : i32, i32
  }
  func.func @transform_1(%arg0: i32, %arg1: i32, %arg2: i32) -> (i32, i32) {
    %c0_i32 = arith.constant 0 : i32
    return %arg0, %arg2 : i32, i32
  }
  func.func @transform_2(%arg0: i32, %arg1: i32, %arg2: i32) -> (i32, i32) {
    %c0_i32 = arith.constant 0 : i32
    return %arg2, %arg1 : i32, i32
  }
  func.func @transform_3(%arg0: i32, %arg1: i32, %arg2: i32) -> (i32, i32) {
    %c0_i32 = arith.constant 0 : i32
    %c0_i32_0 = arith.constant 0 : i32
    return %c0_i32, %arg1 : i32, i32
  }
  func.func @transform_4(%arg0: i32, %arg1: i32, %arg2: i32) -> (i32, i32) {
    %c0_i32 = arith.constant 0 : i32
    return %arg0, %arg1 : i32, i32
  }
}

</mosaic_0001>

<llo_original>
// kernel: tpu_custom_call.1
$region0: #{tpu_custom_call.1}
  #allocation0 [shape = 'u32[]', space=smem, size = 0x4, offset = 0x4, fixed_abs, tag = 'smem constant byte address 0x4 - core index']
  #allocation1 [shape = 'u32[72,128]{1,0:T(1,128)}', space=vmem, size = 0x9000, scoped, tag = 'internal scratch']
  #allocation2 [shape = 'f32[1,1]{1,0:T(1,128)S(6)}', space=smem, size = 0x200, scoped, tag = 'scoped memory for tpu_custom_call.1']
  %s0 = inlined_call_operand.<no memory space> [shape: f32[1,1], index: 0, kind: input, shape index: {}]
  %s1 = inlined_call_operand.hbm [shape: f32[208,384], index: 1, kind: input, shape index: {}]
  %s2 = inlined_call_operand.hbm [shape: f32[384,512], index: 2, kind: input, shape index: {}]
  %s3 = inlined_call_operand.hbm [shape: f32[1,512], index: 3, kind: input, shape index: {}]
  %s4 = inlined_call_operand.hbm [shape: f32[208,512], index: 4, kind: output, shape index: {}]
  %s5 = sld [smem:[#allocation0]]
  $region69: #{tpu_custom_call.1} parent=0
    _
  %s7 = ssub.s32 1, %s5
  %s8 = scalar_select 0, %s7, %s5
  %9 = sst [smem:[#allocation2]] %s0
  $region1: #{tpu_custom_call.1} parent=0
    #allocation3 [shape = 'u8[319488]{0}', space=vmem, size = 0x4e000, scoped, tag = 'input window, operand 1, single buffered']
    #allocation4 [shape = 's32[2]{0}', space=sflag, size = 0x8, scoped, tag = 'scoped memory for tpu_custom_call.1']
    #allocation5 [shape = 's32[2]{0}', space=sflag, size = 0x8, scoped, tag = 'scoped memory for tpu_custom_call.1']
    #allocation6 [shape = 'u8[786432]{0}', space=vmem, size = 0xc0000, scoped, tag = 'input window, operand 2']
    #allocation7 [shape = 's32[2]{0}', space=sflag, size = 0x8, scoped, tag = 'scoped memory for tpu_custom_call.1']
    #allocation8 [shape = 'u8[2048]{0}', space=vmem, size = 0x800, scoped, tag = 'input window, operand 3']
    #allocation9 [shape = 'u8[425984]{0}', space=vmem, size = 0x68000, scoped, tag = 'output window, operand 0']
    %10 = vsyncpa [#allocation4], 0
    %11 = vsyncpa [#allocation7], 0
    %s12 = scalar_lea.sflag [#allocation7], 1
    %13 = vsyncpa %s12, 0
    %14 = vsyncpa [#allocation5], 0
    %s15 = scalar_lea.sflag [#allocation5], 1
    %16 = vsyncpa %s15, 0
    loop: start=0, step=1, limit=4
    $region2: #{tpu_custom_call.1} parent=1 // loop_pre_header
      _
    $region3: #{tpu_custom_call.1} parent=1 // loop_header
      %s18 = sphi 0, %s22
      %p19 = scmp.ge.s32.totalorder %s18, 4
      %s25 = sphi 0, %s44
      %s26 = sphi 0, %s40
      %s27 = sphi 0, %s36
      %s28 = sphi 0, %s25
      %s29 = sphi 0, %s26
      %s30 = sphi 0, %s27
      %s31 = sphi 0, %s28
      %s32 = sphi 0, %s29
      %s33 = sphi 0, %s30
      %s45 = sphi 0, %s45
      %s47 = sphi 0, %s45
      %s48 = sphi 0, %s47
      %s62 = sphi 0, %s48
      %s70 = sphi 0, %s72
      %s73 = sphi 0, %s70
      %s74 = sphi 0, %s73
      %s90 = sphi 0, %s74
      %s98 = sphi 0, %s100
      %s101 = sphi 0, %s98
      %s102 = sphi 0, %s101
      %s118 = sphi 0, %s102
      %s124 = sphi 0, %s126
      %s127 = sphi 0, %s124
      %s128 = sphi 0, %s127
      %s144 = sphi 0, %s128
      %s152 = sphi 0, %s154
      %s155 = sphi 0, %s152
      %s156 = sphi 0, %s155
      %s172 = sphi 0, %s156
    $region4: #{tpu_custom_call.1} parent=1 // loop_header_branch
      %21 = sbr.rel (%p19) target = $region8
    $region5: #{tpu_custom_call.1} parent=1 // loop_body
      %s23 = ssub.s32 %s18, 1
      %s24 = ssub.s32 %s18, 2
      %s34 = sadd.s32 1, %s27
      %p35 = scmp.ge.s32.totalorder %s34, 1
      %s36 = scalar_select %p35, 0, %s34
      %s37 = sadd.s32 1, %s26
      %s38 = scalar_select %p35, %s37, %s26
      %p39 = scmp.ge.s32.totalorder %s38, 2
      %s40 = scalar_select %p39, 0, %s38
      %s41 = sadd.s32 1, %s25
      %s42 = scalar_select %p39, %s41, %s25
      %p43 = scmp.ge.s32.totalorder %s42, 1
      %s44 = scalar_select %p43, 0, %s42
      %s46 = sadd.s32 %s45, 1
      %p49 = scmp.eq.s32.totalorder %s18, 1
      %p50 = scmp.ne.s32.totalorder %s45, %s47
      %p51 = scmp.eq.s32.totalorder %s18, 0
      %p52 = por %p50, %p51
      %p53 = scmp.ne.s32.totalorder %s45, %s47
      %p54 = scmp.eq.s32.totalorder %s23, 1
      %p55 = por %p53, %p54
      %p56 = scmp.ne.s32.totalorder %s47, %s48
      %p57 = scmp.eq.s32.totalorder %s23, 0
      %p58 = por %p56, %p57
      %p59 = scmp.ne.s32.totalorder %s47, %s48
      %p60 = scmp.eq.s32.totalorder %s24, 1
      %p61 = por %p59, %p60
      %p63 = scmp.ne.s32.totalorder %s48, %s62
      %p64 = scmp.eq.s32.totalorder %s24, 0
      %p65 = por %p63, %p64
      %s66 = ssub.s32 %s25, %s44
      %s67 = ssub.s32 %s27, %s36
      %s68 = sor.u32 %s66, %s67
      %p69 = scmp.eq.s32.totalorder %s68, 0
      %s71 = sadd.s32 %s70, 1
      %s72 = scalar_select %p69, %s70, %s71
      %p75 = pneg %p69
      %p76 = scmp.eq.s32.totalorder %s18, 1
      %p77 = por %p75, %p76
      %p78 = scmp.ne.s32.totalorder %s70, %s73
      %p79 = scmp.eq.s32.totalorder %s18, 0
      %p80 = por %p78, %p79
      %p81 = scmp.ne.s32.totalorder %s70, %s73
      %p82 = scmp.eq.s32.totalorder %s23, 1
      %p83 = por %p81, %p82
      %p84 = scmp.ne.s32.totalorder %s73, %s74
      %p85 = scmp.eq.s32.totalorder %s23, 0
      %p86 = por %p84, %p85
      %p87 = scmp.ne.s32.totalorder %s73, %s74
      %p88 = scmp.eq.s32.totalorder %s24, 1
      %p89 = por %p87, %p88
      %p91 = scmp.ne.s32.totalorder %s74, %s90
      %p92 = scmp.eq.s32.totalorder %s24, 0
      %p93 = por %p91, %p92
      %s94 = ssub.s32 %s27, %s36
      %s95 = ssub.s32 %s26, %s40
      %s96 = sor.u32 %s94, %s95
      %p97 = scmp.eq.s32.totalorder %s96, 0
      %s99 = sadd.s32 %s98, 1
      %s100 = scalar_select %p97, %s98, %s99
      %p103 = pneg %p97
      %p104 = scmp.eq.s32.totalorder %s18, 1
      %p105 = por %p103, %p104
      %p106 = scmp.ne.s32.totalorder %s98, %s101
      %p107 = scmp.eq.s32.totalorder %s18, 0
      %p108 = por %p106, %p107
      %p109 = scmp.ne.s32.totalorder %s98, %s101
      %p110 = scmp.eq.s32.totalorder %s23, 1
      %p111 = por %p109, %p110
      %p112 = scmp.ne.s32.totalorder %s101, %s102
      %p113 = scmp.eq.s32.totalorder %s23, 0
      %p114 = por %p112, %p113
      %p115 = scmp.ne.s32.totalorder %s101, %s102
      %p116 = scmp.eq.s32.totalorder %s24, 1
      %p117 = por %p115, %p116
      %p119 = scmp.ne.s32.totalorder %s102, %s118
      %p120 = scmp.eq.s32.totalorder %s24, 0
      %p121 = por %p119, %p120
      %s122 = ssub.s32 %s26, %s40
      %p123 = scmp.eq.s32.totalorder %s122, 0
      %s125 = sadd.s32 %s124, 1
      %s126 = scalar_select %p123, %s124, %s125
      %p129 = pneg %p123
      %p130 = scmp.eq.s32.totalorder %s18, 1
      %p131 = por %p129, %p130
      %p132 = scmp.ne.s32.totalorder %s124, %s127
      %p133 = scmp.eq.s32.totalorder %s18, 0
      %p134 = por %p132, %p133
      %p135 = scmp.ne.s32.totalorder %s124, %s127
      %p136 = scmp.eq.s32.totalorder %s23, 1
      %p137 = por %p135, %p136
      %p138 = scmp.ne.s32.totalorder %s127, %s128
      %p139 = scmp.eq.s32.totalorder %s23, 0
      %p140 = por %p138, %p139
      %p141 = scmp.ne.s32.totalorder %s127, %s128
      %p142 = scmp.eq.s32.totalorder %s24, 1
      %p143 = por %p141, %p142
      %p145 = scmp.ne.s32.totalorder %s128, %s144
      %p146 = scmp.eq.s32.totalorder %s24, 0
      %p147 = por %p145, %p146
      %s148 = ssub.s32 %s25, %s44
      %s149 = ssub.s32 %s26, %s40
      %s150 = sor.u32 %s148, %s149
      %p151 = scmp.eq.s32.totalorder %s150, 0
      %s153 = sadd.s32 %s152, 1
      %s154 = scalar_select %p151, %s152, %s153
      %p157 = pneg %p151
      %p158 = scmp.eq.s32.totalorder %s18, 1
      %p159 = por %p157, %p158
      %p160 = scmp.ne.s32.totalorder %s152, %s155
      %p161 = scmp.eq.s32.totalorder %s18, 0
      %p162 = por %p160, %p161
      %p163 = scmp.ne.s32.totalorder %s152, %s155
      %p164 = scmp.eq.s32.totalorder %s23, 1
      %p165 = por %p163, %p164
      %p166 = scmp.ne.s32.totalorder %s155, %s156
      %p167 = scmp.eq.s32.totalorder %s23, 0
      %p168 = por %p166, %p167
      %p169 = scmp.ne.s32.totalorder %s155, %s156
      %p170 = scmp.eq.s32.totalorder %s24, 1
      %p171 = por %p169, %p170
      %p173 = scmp.ne.s32.totalorder %s156, %s172
      %p174 = scmp.eq.s32.totalorder %s24, 0
      %p175 = por %p173, %p174
      %p176 = scmp.le.s32.totalorder 1, %s18
      %p177 = scmp.lt.s32.totalorder %s18, 3
      %p178 = pnand %p176, %p177
      %p179 = pneg %p178
      // Predicated region
      $region9: #{tpu_custom_call.1} parent=5 // pred_check
        _
      $region10: #{tpu_custom_call.1} parent=5 // pred_check_branch
        %181 = sbr.rel (%p178) target = $region12
      $region11: #{tpu_custom_call.1} parent=5 // pred_region
        %s182 = ssub.s32 %s18, 1
        // Predicated region
        $region13: #{tpu_custom_call.1} parent=11 // pred_check
          %p183 = pneg %p58
        $region14: #{tpu_custom_call.1} parent=11 // pred_check_branch
          %185 = sbr.rel (%p183) target = $region16
        $region15: #{tpu_custom_call.1} parent=11 // pred_region
          _
        $region16: #{tpu_custom_call.1} parent=11 // pred_fallthru
          _
        // Predicated region
        $region17: #{tpu_custom_call.1} parent=11 // pred_check
          %p186 = pneg %p86
        $region18: #{tpu_custom_call.1} parent=11 // pred_check_branch
          %188 = sbr.rel (%p186) target = $region20
        $region19: #{tpu_custom_call.1} parent=11 // pred_region
          %s189 = smul.u32 26, %s28
          %s190 = smul.u32 3, %s30
          %192 = vsyncadd [#allocation4], 0
          %s193 = smul.addr %s189, 3
          %s194 = sadd.s32 %s190, %s193
          %s195 = smul.addr %s194, 8
          %s196 = scalar_lea.hbm %s1, %s195
          %s197 = sshll.u32 %s196, 4
          %s198 = int_to_ptr.hbm [resolvable:$true] %s197
          %s199 = sshll.u32 [#allocation3], 4
          %s200 = int_to_ptr.vmem [resolvable:$true] %s199
          %205 = dma.hbm_to_vmem [thread:$0]  %s198, 9984, %s200, [#allocation4], 384, 384, 24
        $region20: #{tpu_custom_call.1} parent=11 // pred_fallthru
          _
      $region12: #{tpu_custom_call.1} parent=5 // pred_fallthru
        _
      %p206 = scmp.lt.s32.totalorder %s18, 2
      // Predicated region
      $region21: #{tpu_custom_call.1} parent=5 // pred_check
        %p207 = pneg %p206
      $region22: #{tpu_custom_call.1} parent=5 // pred_check_branch
        %209 = sbr.rel (%p207) target = $region24
      $region23: #{tpu_custom_call.1} parent=5 // pred_region
        // Predicated region
        $region25: #{tpu_custom_call.1} parent=23 // pred_check
          %p210 = pneg %p108
        $region26: #{tpu_custom_call.1} parent=23 // pred_check_branch
          %212 = sbr.rel (%p210) target = $region28
        $region27: #{tpu_custom_call.1} parent=23 // pred_region
          %s213 = sand.u32 %s18, 1
          %s214 = scalar_lea.sflag [#allocation7], %s213
          %s215 = sand.u32 %s98, 1
          %s216 = smul.addr %s215, 768
          %s217 = scalar_lea.vmem [#allocation6], %s216
          %s218 = smul.u32 48, %s27
          %s219 = smul.u32 2, %s26
          %221 = vsyncadd %s214, 0
          %s222 = smul.addr %s218, 4
          %s223 = sadd.s32 %s219, %s222
          %s224 = smul.addr %s223, 8
          %s225 = scalar_lea.hbm %s2, %s224
          %s226 = sshll.u32 %s225, 4
          %s227 = int_to_ptr.hbm [resolvable:$true] %s226
          %s228 = sshll.u32 %s217, 4
          %s229 = int_to_ptr.vmem [resolvable:$true] %s228
          %234 = dma.hbm_to_vmem [thread:$0]  %s227, 12288, %s229, %s214, 512, 256, 16
        $region28: #{tpu_custom_call.1} parent=23 // pred_fallthru
          _
        // Predicated region
        $region29: #{tpu_custom_call.1} parent=23 // pred_check
          %p235 = pneg %p134
        $region30: #{tpu_custom_call.1} parent=23 // pred_check_branch
          %237 = sbr.rel (%p235) target = $region32
        $region31: #{tpu_custom_call.1} parent=23 // pred_region
          %s238 = sand.u32 %s18, 1
          %s239 = scalar_lea.sflag [#allocation7], %s238
          %s240 = sand.u32 %s124, 1
          %s241 = smul.addr %s240, 2
          %s242 = scalar_lea.vmem [#allocation8], %s241
          %s243 = smul.u32 2, %s26
          %245 = vsyncadd %s239, 0
          %s246 = scalar_lea.hbm %s3, %s243
          %s248 = sshll.u32 %s246, 4
          %s249 = int_to_ptr.hbm [resolvable:$true] %s248
          %s250 = sshll.u32 %s242, 4
          %s251 = int_to_ptr.vmem [resolvable:$true] %s250
          %253 = dma.hbm_to_vmem [thread:$0]  %s249, 32, %s251, %s239
        $region32: #{tpu_custom_call.1} parent=23 // pred_fallthru
          _
      $region24: #{tpu_custom_call.1} parent=5 // pred_fallthru
        _
      %p254 = scmp.le.s32.totalorder 1, %s18
      %p255 = scmp.lt.s32.totalorder %s18, 3
      %p256 = pnand %p254, %p255
      %p257 = pneg %p256
      // Predicated region
      $region33: #{tpu_custom_call.1} parent=5 // pred_check
        _
      $region34: #{tpu_custom_call.1} parent=5 // pred_check_branch
        %259 = sbr.rel (%p256) target = $region36
      $region35: #{tpu_custom_call.1} parent=5 // pred_region
        %s260 = ssub.s32 %s18, 1
        // Predicated region
        $region37: #{tpu_custom_call.1} parent=35 // pred_check
          %p261 = pneg %p86
        $region38: #{tpu_custom_call.1} parent=35 // pred_check_branch
          %263 = sbr.rel (%p261) target = $region40
        $region39: #{tpu_custom_call.1} parent=35 // pred_region
          %265 = dma.done [#allocation4], 9984
        $region40: #{tpu_custom_call.1} parent=35 // pred_fallthru
          _
        %s266 = sand.u32 %s23, 1
        %s267 = scalar_lea.sflag [#allocation7], %s266
        %s268 = sand.u32 %s101, 1
        %s269 = smul.addr %s268, 768
        %s270 = scalar_lea.vmem [#allocation6], %s269
        // Predicated region
        $region41: #{tpu_custom_call.1} parent=35 // pred_check
          %p271 = pneg %p114
        $region42: #{tpu_custom_call.1} parent=35 // pred_check_branch
          %273 = sbr.rel (%p271) target = $region44
        $region43: #{tpu_custom_call.1} parent=35 // pred_region
          %275 = dma.done %s267, 12288
        $region44: #{tpu_custom_call.1} parent=35 // pred_fallthru
          _
        %s276 = sand.u32 %s23, 1
        %s277 = scalar_lea.sflag [#allocation7], %s276
        %s278 = sand.u32 %s127, 1
        %s279 = smul.addr %s278, 2
        %s280 = scalar_lea.vmem [#allocation8], %s279
        // Predicated region
        $region45: #{tpu_custom_call.1} parent=35 // pred_check
          %p281 = pneg %p140
        $region46: #{tpu_custom_call.1} parent=35 // pred_check_branch
          %283 = sbr.rel (%p281) target = $region48
        $region47: #{tpu_custom_call.1} parent=35 // pred_region
          %285 = dma.done %s277, 32
        $region48: #{tpu_custom_call.1} parent=35 // pred_fallthru
          _
        %p286 = pneg %p58
        %p287 = pneg %p55
        %p288 = pneg %p86
        %p289 = pneg %p83
        %s290 = sand.u32 %s23, 1
        %s291 = scalar_lea.sflag [#allocation7], %s290
        %s292 = sand.u32 %s101, 1
        %s293 = smul.addr %s292, 768
        %s294 = scalar_lea.vmem [#allocation6], %s293
        %p295 = pneg %p114
        %p296 = pneg %p111
        %s297 = sand.u32 %s23, 1
        %s298 = scalar_lea.sflag [#allocation7], %s297
        %s299 = sand.u32 %s127, 1
        %s300 = smul.addr %s299, 2
        %s301 = scalar_lea.vmem [#allocation8], %s300
        %p302 = pneg %p140
        %p303 = pneg %p137
        %p304 = pneg %p168
        %p305 = pneg %p165
        %s306 = sand.u32 %s155, 1
        %s307 = scalar_lea.sflag [#allocation5], %s306
        %s308 = sand.u32 %s155, 1
        %s309 = smul.addr %s308, 416
        %s310 = scalar_lea.vmem [#allocation9], %s309
        %s311 = smul.u32 26, %s28
        %s312 = smul.u32 3, %s30
        %s313 = smul.u32 48, %s30
        %s314 = smul.u32 2, %s29
        %s315 = smul.u32 2, %s29
        %s316 = smul.u32 26, %s28
        %s317 = smul.u32 2, %s29
        %p318 = scmp.eq.s32.totalorder %s30, 0
        // Predicated region
        $region49: #{tpu_custom_call.1} parent=35 // pred_check
          %p319 = pneg %p318
        $region50: #{tpu_custom_call.1} parent=35 // pred_check_branch
          %321 = sbr.rel (%p319) target = $region52
        $region51: #{tpu_custom_call.1} parent=35 // pred_region
          %322 = vst [vmem:[%s310] sm:$0xff] 0.0
          %323 = vst [vmem:[%s310 + $0x8] sm:$0xff] 0.0
          %324 = vst [vmem:[%s310 + $0x10] sm:$0xff] 0.0
          %325 = vst [vmem:[%s310 + $0x18] sm:$0xff] 0.0
          %326 = vst [vmem:[%s310 + $0x20] sm:$0xff] 0.0
          %327 = vst [vmem:[%s310 + $0x28] sm:$0xff] 0.0
          %328 = vst [vmem:[%s310 + $0x30] sm:$0xff] 0.0
          %329 = vst [vmem:[%s310 + $0x38] sm:$0xff] 0.0
          %330 = vst [vmem:[%s310 + $0x40] sm:$0xff] 0.0
          %331 = vst [vmem:[%s310 + $0x48] sm:$0xff] 0.0
          %332 = vst [vmem:[%s310 + $0x50] sm:$0xff] 0.0
          %333 = vst [vmem:[%s310 + $0x58] sm:$0xff] 0.0
          %334 = vst [vmem:[%s310 + $0x60] sm:$0xff] 0.0
          %335 = vst [vmem:[%s310 + $0x68] sm:$0xff] 0.0
          %336 = vst [vmem:[%s310 + $0x70] sm:$0xff] 0.0
          %337 = vst [vmem:[%s310 + $0x78] sm:$0xff] 0.0
          %338 = vst [vmem:[%s310 + $0x80] sm:$0xff] 0.0
          %339 = vst [vmem:[%s310 + $0x88] sm:$0xff] 0.0
          %340 = vst [vmem:[%s310 + $0x90] sm:$0xff] 0.0
          %341 = vst [vmem:[%s310 + $0x98] sm:$0xff] 0.0
          %342 = vst [vmem:[%s310 + $0xa0] sm:$0xff] 0.0
          %343 = vst [vmem:[%s310 + $0xa8] sm:$0xff] 0.0
          %344 = vst [vmem:[%s310 + $0xb0] sm:$0xff] 0.0
          %345 = vst [vmem:[%s310 + $0xb8] sm:$0xff] 0.0
          %346 = vst [vmem:[%s310 + $0xc0] sm:$0xff] 0.0
          %347 = vst [vmem:[%s310 + $0xc8] sm:$0xff] 0.0
          %348 = vst [vmem:[%s310 + $0xd0] sm:$0xff] 0.0
          %349 = vst [vmem:[%s310 + $0xd8] sm:$0xff] 0.0
          %350 = vst [vmem:[%s310 + $0xe0] sm:$0xff] 0.0
          %351 = vst [vmem:[%s310 + $0xe8] sm:$0xff] 0.0
          %352 = vst [vmem:[%s310 + $0xf0] sm:$0xff] 0.0
          %353 = vst [vmem:[%s310 + $0xf8] sm:$0xff] 0.0
          %354 = vst [vmem:[%s310 + $0x100] sm:$0xff] 0.0
          %355 = vst [vmem:[%s310 + $0x108] sm:$0xff] 0.0
          %356 = vst [vmem:[%s310 + $0x110] sm:$0xff] 0.0
          %357 = vst [vmem:[%s310 + $0x118] sm:$0xff] 0.0
          %358 = vst [vmem:[%s310 + $0x120] sm:$0xff] 0.0
          %359 = vst [vmem:[%s310 + $0x128] sm:$0xff] 0.0
          %360 = vst [vmem:[%s310 + $0x130] sm:$0xff] 0.0
          %361 = vst [vmem:[%s310 + $0x138] sm:$0xff] 0.0
          %362 = vst [vmem:[%s310 + $0x140] sm:$0xff] 0.0
          %363 = vst [vmem:[%s310 + $0x148] sm:$0xff] 0.0
          %364 = vst [vmem:[%s310 + $0x150] sm:$0xff] 0.0
          %365 = vst [vmem:[%s310 + $0x158] sm:$0xff] 0.0
          %366 = vst [vmem:[%s310 + $0x160] sm:$0xff] 0.0
          %367 = vst [vmem:[%s310 + $0x168] sm:$0xff] 0.0
          %368 = vst [vmem:[%s310 + $0x170] sm:$0xff] 0.0
          %369 = vst [vmem:[%s310 + $0x178] sm:$0xff] 0.0
          %370 = vst [vmem:[%s310 + $0x180] sm:$0xff] 0.0
          %371 = vst [vmem:[%s310 + $0x188] sm:$0xff] 0.0
          %372 = vst [vmem:[%s310 + $0x190] sm:$0xff] 0.0
          %373 = vst [vmem:[%s310 + $0x198] sm:$0xff] 0.0
        $region52: #{tpu_custom_call.1} parent=35 // pred_fallthru
          _
        %v374 = vld [vmem:[%s310] sm:$0xff]
        %v375 = vld [vmem:[%s310 + $0x8] sm:$0xff]
        %v376 = vld [vmem:[%s310 + $0x10] sm:$0xff]
        %v377 = vld [vmem:[%s310 + $0x18] sm:$0xff]
        %v378 = vld [vmem:[%s310 + $0x20] sm:$0xff]
        %v379 = vld [vmem:[%s310 + $0x28] sm:$0xff]
        %v380 = vld [vmem:[%s310 + $0x30] sm:$0xff]
        %v381 = vld [vmem:[%s310 + $0x38] sm:$0xff]
        %v382 = vld [vmem:[%s310 + $0x40] sm:$0xff]
        %v383 = vld [vmem:[%s310 + $0x48] sm:$0xff]
        %v384 = vld [vmem:[%s310 + $0x50] sm:$0xff]
        %v385 = vld [vmem:[%s310 + $0x58] sm:$0xff]
        %v386 = vld [vmem:[%s310 + $0x60] sm:$0xff]
        %v387 = vld [vmem:[%s310 + $0x68] sm:$0xff]
        %v388 = vld [vmem:[%s310 + $0x70] sm:$0xff]
        %v389 = vld [vmem:[%s310 + $0x78] sm:$0xff]
        %v390 = vld [vmem:[%s310 + $0x80] sm:$0xff]
        %v391 = vld [vmem:[%s310 + $0x88] sm:$0xff]
        %v392 = vld [vmem:[%s310 + $0x90] sm:$0xff]
        %v393 = vld [vmem:[%s310 + $0x98] sm:$0xff]
        %v394 = vld [vmem:[%s310 + $0xa0] sm:$0xff]
        %v395 = vld [vmem:[%s310 + $0xa8] sm:$0xff]
        %v396 = vld [vmem:[%s310 + $0xb0] sm:$0xff]
        %v397 = vld [vmem:[%s310 + $0xb8] sm:$0xff]
        %v398 = vld [vmem:[%s310 + $0xc0] sm:$0xff]
        %v399 = vld [vmem:[%s310 + $0xc8] sm:$0xff]
        %v400 = vld [vmem:[%s310 + $0xd0] sm:$0xff]
        %v401 = vld [vmem:[%s310 + $0xd8] sm:$0xff]
        %v402 = vld [vmem:[%s310 + $0xe0] sm:$0xff]
        %v403 = vld [vmem:[%s310 + $0xe8] sm:$0xff]
        %v404 = vld [vmem:[%s310 + $0xf0] sm:$0xff]
        %v405 = vld [vmem:[%s310 + $0xf8] sm:$0xff]
        %v406 = vld [vmem:[%s310 + $0x100] sm:$0xff]
        %v407 = vld [vmem:[%s310 + $0x108] sm:$0xff]
        %v408 = vld [vmem:[%s310 + $0x110] sm:$0xff]
        %v409 = vld [vmem:[%s310 + $0x118] sm:$0xff]
        %v410 = vld [vmem:[%s310 + $0x120] sm:$0xff]
        %v411 = vld [vmem:[%s310 + $0x128] sm:$0xff]
        %v412 = vld [vmem:[%s310 + $0x130] sm:$0xff]
        %v413 = vld [vmem:[%s310 + $0x138] sm:$0xff]
        %v414 = vld [vmem:[%s310 + $0x140] sm:$0xff]
        %v415 = vld [vmem:[%s310 + $0x148] sm:$0xff]
        %v416 = vld [vmem:[%s310 + $0x150] sm:$0xff]
        %v417 = vld [vmem:[%s310 + $0x158] sm:$0xff]
        %v418 = vld [vmem:[%s310 + $0x160] sm:$0xff]
        %v419 = vld [vmem:[%s310 + $0x168] sm:$0xff]
        %v420 = vld [vmem:[%s310 + $0x170] sm:$0xff]
        %v421 = vld [vmem:[%s310 + $0x178] sm:$0xff]
        %v422 = vld [vmem:[%s310 + $0x180] sm:$0xff]
        %v423 = vld [vmem:[%s310 + $0x188] sm:$0xff]
        %v424 = vld [vmem:[%s310 + $0x190] sm:$0xff]
        %v425 = vld [vmem:[%s310 + $0x198] sm:$0xff]
        %v426 = vld [vmem:[#allocation3] sm:$0xff]
        %v427 = vld [vmem:[#allocation3 + $0x8] sm:$0xff]
        %v428 = vld [vmem:[#allocation3 + $0x10] sm:$0xff]
        %v429 = vld [vmem:[#allocation3 + $0x18] sm:$0xff]
        %v430 = vld [vmem:[#allocation3 + $0x20] sm:$0xff]
        %v431 = vld [vmem:[#allocation3 + $0x28] sm:$0xff]
        %v432 = vld [vmem:[#allocation3 + $0x30] sm:$0xff]
        %v433 = vld [vmem:[#allocation3 + $0x38] sm:$0xff]
        %v434 = vld [vmem:[#allocation3 + $0x40] sm:$0xff]
        %v435 = vld [vmem:[#allocation3 + $0x48] sm:$0xff]
        %v436 = vld [vmem:[#allocation3 + $0x50] sm:$0xff]
        %v437 = vld [vmem:[#allocation3 + $0x58] sm:$0xff]
        %v438 = vld [vmem:[#allocation3 + $0x60] sm:$0xff]
        %v439 = vld [vmem:[#allocation3 + $0x68] sm:$0xff]
        %v440 = vld [vmem:[#allocation3 + $0x70] sm:$0xff]
        %v441 = vld [vmem:[#allocation3 + $0x78] sm:$0xff]
        %v442 = vld [vmem:[#allocation3 + $0x80] sm:$0xff]
        %v443 = vld [vmem:[#allocation3 + $0x88] sm:$0xff]
        %v444 = vld [vmem:[#allocation3 + $0x90] sm:$0xff]
        %v445 = vld [vmem:[#allocation3 + $0x98] sm:$0xff]
        %v446 = vld [vmem:[#allocation3 + $0xa0] sm:$0xff]
        %v447 = vld [vmem:[#allocation3 + $0xa8] sm:$0xff]
        %v448 = vld [vmem:[#allocation3 + $0xb0] sm:$0xff]
        %v449 = vld [vmem:[#allocation3 + $0xb8] sm:$0xff]
        %v450 = vld [vmem:[#allocation3 + $0xc0] sm:$0xff]
        %v451 = vld [vmem:[#allocation3 + $0xc8] sm:$0xff]
        %v452 = vld [vmem:[#allocation3 + $0xd0] sm:$0xff]
        %v453 = vld [vmem:[#allocation3 + $0xd8] sm:$0xff]
        %v454 = vld [vmem:[#allocation3 + $0xe0] sm:$0xff]
        %v455 = vld [vmem:[#allocation3 + $0xe8] sm:$0xff]
        %v456 = vld [vmem:[#allocation3 + $0xf0] sm:$0xff]
        %v457 = vld [vmem:[#allocation3 + $0xf8] sm:$0xff]
        %v458 = vld [vmem:[#allocation3 + $0x100] sm:$0xff]
        %v459 = vld [vmem:[#allocation3 + $0x108] sm:$0xff]
        %v460 = vld [vmem:[#allocation3 + $0x110] sm:$0xff]
        %v461 = vld [vmem:[#allocation3 + $0x118] sm:$0xff]
        %v462 = vld [vmem:[#allocation3 + $0x120] sm:$0xff]
        %v463 = vld [vmem:[#allocation3 + $0x128] sm:$0xff]
        %v464 = vld [vmem:[#allocation3 + $0x130] sm:$0xff]
        %v465 = vld [vmem:[#allocation3 + $0x138] sm:$0xff]
        %v466 = vld [vmem:[#allocation3 + $0x140] sm:$0xff]
        %v467 = vld [vmem:[#allocation3 + $0x148] sm:$0xff]
        %v468 = vld [vmem:[#allocation3 + $0x150] sm:$0xff]
        %v469 = vld [vmem:[#allocation3 + $0x158] sm:$0xff]
        %v470 = vld [vmem:[#allocation3 + $0x160] sm:$0xff]
        %v471 = vld [vmem:[#allocation3 + $0x168] sm:$0xff]
        %v472 = vld [vmem:[#allocation3 + $0x170] sm:$0xff]
        %v473 = vld [vmem:[#allocation3 + $0x178] sm:$0xff]
        %v474 = vld [vmem:[#allocation3 + $0x180] sm:$0xff]
        %v475 = vld [vmem:[#allocation3 + $0x188] sm:$0xff]
        %v476 = vld [vmem:[#allocation3 + $0x190] sm:$0xff]
        %v477 = vld [vmem:[#allocation3 + $0x198] sm:$0xff]
        %v478 = vld [vmem:[#allocation3 + $0x1a0] sm:$0xff]
        %v479 = vld [vmem:[#allocation3 + $0x1a8] sm:$0xff]
        %v480 = vld [vmem:[#allocation3 + $0x1b0] sm:$0xff]
        %v481 = vld [vmem:[#allocation3 + $0x1b8] sm:$0xff]
        %v482 = vld [vmem:[#allocation3 + $0x1c0] sm:$0xff]
        %v483 = vld [vmem:[#allocation3 + $0x1c8] sm:$0xff]
        %v484 = vld [vmem:[#allocation3 + $0x1d0] sm:$0xff]
        %v485 = vld [vmem:[#allocation3 + $0x1d8] sm:$0xff]
        %v486 = vld [vmem:[#allocation3 + $0x1e0] sm:$0xff]
        %v487 = vld [vmem:[#allocation3 + $0x1e8] sm:$0xff]
        %v488 = vld [vmem:[#allocation3 + $0x1f0] sm:$0xff]
        %v489 = vld [vmem:[#allocation3 + $0x1f8] sm:$0xff]
        %v490 = vld [vmem:[#allocation3 + $0x200] sm:$0xff]
        %v491 = vld [vmem:[#allocation3 + $0x208] sm:$0xff]
        %v492 = vld [vmem:[#allocation3 + $0x210] sm:$0xff]
        %v493 = vld [vmem:[#allocation3 + $0x218] sm:$0xff]
        %v494 = vld [vmem:[#allocation3 + $0x220] sm:$0xff]
        %v495 = vld [vmem:[#allocation3 + $0x228] sm:$0xff]
        %v496 = vld [vmem:[#allocation3 + $0x230] sm:$0xff]
        %v497 = vld [vmem:[#allocation3 + $0x238] sm:$0xff]
        %v498 = vld [vmem:[#allocation3 + $0x240] sm:$0xff]
        %v499 = vld [vmem:[#allocation3 + $0x248] sm:$0xff]
        %v500 = vld [vmem:[#allocation3 + $0x250] sm:$0xff]
        %v501 = vld [vmem:[#allocation3 + $0x258] sm:$0xff]
        %v502 = vld [vmem:[#allocation3 + $0x260] sm:$0xff]
        %v503 = vld [vmem:[#allocation3 + $0x268] sm:$0xff]
        %v504 = vld [vmem:[%s270] sm:$0xff]
        %v505 = vld [vmem:[%s270 + $0x8] sm:$0xff]
        %v506 = vld [vmem:[%s270 + $0x10] sm:$0xff]
        %v507 = vld [vmem:[%s270 + $0x18] sm:$0xff]
        %v508 = vld [vmem:[%s270 + $0x20] sm:$0xff]
        %v509 = vld [vmem:[%s270 + $0x28] sm:$0xff]
        %v510 = vld [vmem:[%s270 + $0x30] sm:$0xff]
        %v511 = vld [vmem:[%s270 + $0x38] sm:$0xff]
        %v512 = vld [vmem:[%s270 + $0x40] sm:$0xff]
        %v513 = vld [vmem:[%s270 + $0x48] sm:$0xff]
        %v514 = vld [vmem:[%s270 + $0x50] sm:$0xff]
        %v515 = vld [vmem:[%s270 + $0x58] sm:$0xff]
        %v516 = vld [vmem:[%s270 + $0x60] sm:$0xff]
        %v517 = vld [vmem:[%s270 + $0x68] sm:$0xff]
        %v518 = vld [vmem:[%s270 + $0x70] sm:$0xff]
        %v519 = vld [vmem:[%s270 + $0x78] sm:$0xff]
        %v520 = vld [vmem:[%s270 + $0x80] sm:$0xff]
        %v521 = vld [vmem:[%s270 + $0x88] sm:$0xff]
        %v522 = vld [vmem:[%s270 + $0x90] sm:$0xff]
        %v523 = vld [vmem:[%s270 + $0x98] sm:$0xff]
        %v524 = vld [vmem:[%s270 + $0xa0] sm:$0xff]
        %v525 = vld [vmem:[%s270 + $0xa8] sm:$0xff]
        %v526 = vld [vmem:[%s270 + $0xb0] sm:$0xff]
        %v527 = vld [vmem:[%s270 + $0xb8] sm:$0xff]
        %v528 = vld [vmem:[%s270 + $0xc0] sm:$0xff]
        %v529 = vld [vmem:[%s270 + $0xc8] sm:$0xff]
        %v530 = vld [vmem:[%s270 + $0xd0] sm:$0xff]
        %v531 = vld [vmem:[%s270 + $0xd8] sm:$0xff]
        %v532 = vld [vmem:[%s270 + $0xe0] sm:$0xff]
        %v533 = vld [vmem:[%s270 + $0xe8] sm:$0xff]
        %v534 = vld [vmem:[%s270 + $0xf0] sm:$0xff]
        %v535 = vld [vmem:[%s270 + $0xf8] sm:$0xff]
        %v536 = vld [vmem:[%s270 + $0x100] sm:$0xff]
        %v537 = vld [vmem:[%s270 + $0x108] sm:$0xff]
        %v538 = vld [vmem:[%s270 + $0x110] sm:$0xff]
        %v539 = vld [vmem:[%s270 + $0x118] sm:$0xff]
        %v540 = vld [vmem:[%s270 + $0x120] sm:$0xff]
        %v541 = vld [vmem:[%s270 + $0x128] sm:$0xff]
        %v542 = vld [vmem:[%s270 + $0x130] sm:$0xff]
        %v543 = vld [vmem:[%s270 + $0x138] sm:$0xff]
        %v544 = vld [vmem:[%s270 + $0x140] sm:$0xff]
        %v545 = vld [vmem:[%s270 + $0x148] sm:$0xff]
        %v546 = vld [vmem:[%s270 + $0x150] sm:$0xff]
        %v547 = vld [vmem:[%s270 + $0x158] sm:$0xff]
        %v548 = vld [vmem:[%s270 + $0x160] sm:$0xff]
        %v549 = vld [vmem:[%s270 + $0x168] sm:$0xff]
        %v550 = vld [vmem:[%s270 + $0x170] sm:$0xff]
        %v551 = vld [vmem:[%s270 + $0x178] sm:$0xff]
        %v552 = vld [vmem:[%s270 + $0x180] sm:$0xff]
        %v553 = vld [vmem:[%s270 + $0x188] sm:$0xff]
        %v554 = vld [vmem:[%s270 + $0x190] sm:$0xff]
        %v555 = vld [vmem:[%s270 + $0x198] sm:$0xff]
        %v556 = vld [vmem:[%s270 + $0x1a0] sm:$0xff]
        %v557 = vld [vmem:[%s270 + $0x1a8] sm:$0xff]
        %v558 = vld [vmem:[%s270 + $0x1b0] sm:$0xff]
        %v559 = vld [vmem:[%s270 + $0x1b8] sm:$0xff]
        %v560 = vld [vmem:[%s270 + $0x1c0] sm:$0xff]
        %v561 = vld [vmem:[%s270 + $0x1c8] sm:$0xff]
        %v562 = vld [vmem:[%s270 + $0x1d0] sm:$0xff]
        %v563 = vld [vmem:[%s270 + $0x1d8] sm:$0xff]
        %v564 = vld [vmem:[%s270 + $0x1e0] sm:$0xff]
        %v565 = vld [vmem:[%s270 + $0x1e8] sm:$0xff]
        %v566 = vld [vmem:[%s270 + $0x1f0] sm:$0xff]
        %v567 = vld [vmem:[%s270 + $0x1f8] sm:$0xff]
        %v568 = vld [vmem:[%s270 + $0x200] sm:$0xff]
        %v569 = vld [vmem:[%s270 + $0x208] sm:$0xff]
        %v570 = vld [vmem:[%s270 + $0x210] sm:$0xff]
        %v571 = vld [vmem:[%s270 + $0x218] sm:$0xff]
        %v572 = vld [vmem:[%s270 + $0x220] sm:$0xff]
        %v573 = vld [vmem:[%s270 + $0x228] sm:$0xff]
        %v574 = vld [vmem:[%s270 + $0x230] sm:$0xff]
        %v575 = vld [vmem:[%s270 + $0x238] sm:$0xff]
        %v576 = vld [vmem:[%s270 + $0x240] sm:$0xff]
        %v577 = vld [vmem:[%s270 + $0x248] sm:$0xff]
        %v578 = vld [vmem:[%s270 + $0x250] sm:$0xff]
        %v579 = vld [vmem:[%s270 + $0x258] sm:$0xff]
        %v580 = vld [vmem:[%s270 + $0x260] sm:$0xff]
        %v581 = vld [vmem:[%s270 + $0x268] sm:$0xff]
        %v582 = vld [vmem:[%s270 + $0x270] sm:$0xff]
        %v583 = vld [vmem:[%s270 + $0x278] sm:$0xff]
        %v584 = vld [vmem:[%s270 + $0x280] sm:$0xff]
        %v585 = vld [vmem:[%s270 + $0x288] sm:$0xff]
        %v586 = vld [vmem:[%s270 + $0x290] sm:$0xff]
        %v587 = vld [vmem:[%s270 + $0x298] sm:$0xff]
        %v588 = vld [vmem:[%s270 + $0x2a0] sm:$0xff]
        %v589 = vld [vmem:[%s270 + $0x2a8] sm:$0xff]
        %v590 = vld [vmem:[%s270 + $0x2b0] sm:$0xff]
        %v591 = vld [vmem:[%s270 + $0x2b8] sm:$0xff]
        %v592 = vld [vmem:[%s270 + $0x2c0] sm:$0xff]
        %v593 = vld [vmem:[%s270 + $0x2c8] sm:$0xff]
        %v594 = vld [vmem:[%s270 + $0x2d0] sm:$0xff]
        %v595 = vld [vmem:[%s270 + $0x2d8] sm:$0xff]
        %v596 = vld [vmem:[%s270 + $0x2e0] sm:$0xff]
        %v597 = vld [vmem:[%s270 + $0x2e8] sm:$0xff]
        %v598 = vld [vmem:[%s270 + $0x2f0] sm:$0xff]
        %v599 = vld [vmem:[%s270 + $0x2f8] sm:$0xff]
        %600 = vmatpush.msra.mxu0 %v534
        %601 = vmatpush.msra.mxu0 %v532
        %602 = vmatpush.msra.mxu0 %v530
        %603 = vmatpush.msra.mxu0 %v528
        %604 = vmatpush.msra.mxu0 %v526
        %605 = vmatpush.msra.mxu0 %v524
        %606 = vmatpush.msra.mxu0 %v522
        %607 = vmatpush.msra.mxu0 %v520
        %608 = vmatpush.msra.mxu0 %v518
        %609 = vmatpush.msra.mxu0 %v516
        %610 = vmatpush.msra.mxu0 %v514
        %611 = vmatpush.msra.mxu0 %v512
        %612 = vmatpush.msra.mxu0 %v510
        %613 = vmatpush.msra.mxu0 %v508
        %614 = vmatpush.msra.mxu0 %v506
        %615 = vmatpush.msra.mxu0 %v504
        %616 = vmatmul.f32.gmra.mxu0 %v426
        %v617 = vpop.f32.mrf.mxu0
        %v618 = vadd.f32 0.0, %v617
        %619 = vmatmul.f32.gmra.mxu0 %v429
        %v620 = vpop.f32.mrf.mxu0
        %v621 = vadd.f32 0.0, %v620
        %622 = vmatmul.f32.gmra.mxu0 %v432
        %v623 = vpop.f32.mrf.mxu0
        %v624 = vadd.f32 0.0, %v623
        %625 = vmatmul.f32.gmra.mxu0 %v435
        %v626 = vpop.f32.mrf.mxu0
        %v627 = vadd.f32 0.0, %v626
        %628 = vmatmul.f32.gmra.mxu0 %v438
        %v629 = vpop.f32.mrf.mxu0
        %v630 = vadd.f32 0.0, %v629
        %631 = vmatmul.f32.gmra.mxu0 %v441
        %v632 = vpop.f32.mrf.mxu0
        %v633 = vadd.f32 0.0, %v632
        %634 = vmatmul.f32.gmra.mxu0 %v444
        %v635 = vpop.f32.mrf.mxu0
        %v636 = vadd.f32 0.0, %v635
        %637 = vmatmul.f32.gmra.mxu0 %v447
        %v638 = vpop.f32.mrf.mxu0
        %v639 = vadd.f32 0.0, %v638
        %640 = vmatmul.f32.gmra.mxu0 %v450
        %v641 = vpop.f32.mrf.mxu0
        %v642 = vadd.f32 0.0, %v641
        %643 = vmatmul.f32.gmra.mxu0 %v453
        %v644 = vpop.f32.mrf.mxu0
        %v645 = vadd.f32 0.0, %v644
        %646 = vmatmul.f32.gmra.mxu0 %v456
        %v647 = vpop.f32.mrf.mxu0
        %v648 = vadd.f32 0.0, %v647
        %649 = vmatmul.f32.gmra.mxu0 %v459
        %v650 = vpop.f32.mrf.mxu0
        %v651 = vadd.f32 0.0, %v650
        %652 = vmatmul.f32.gmra.mxu0 %v462
        %v653 = vpop.f32.mrf.mxu0
        %v654 = vadd.f32 0.0, %v653
        %655 = vmatmul.f32.gmra.mxu0 %v465
        %v656 = vpop.f32.mrf.mxu0
        %v657 = vadd.f32 0.0, %v656
        %658 = vmatmul.f32.gmra.mxu0 %v468
        %v659 = vpop.f32.mrf.mxu0
        %v660 = vadd.f32 0.0, %v659
        %661 = vmatmul.f32.gmra.mxu0 %v471
        %v662 = vpop.f32.mrf.mxu0
        %v663 = vadd.f32 0.0, %v662
        %664 = vmatmul.f32.gmra.mxu0 %v474
        %v665 = vpop.f32.mrf.mxu0
        %v666 = vadd.f32 0.0, %v665
        %667 = vmatmul.f32.gmra.mxu0 %v477
        %v668 = vpop.f32.mrf.mxu0
        %v669 = vadd.f32 0.0, %v668
        %670 = vmatmul.f32.gmra.mxu0 %v480
        %v671 = vpop.f32.mrf.mxu0
        %v672 = vadd.f32 0.0, %v671
        %673 = vmatmul.f32.gmra.mxu0 %v483
        %v674 = vpop.f32.mrf.mxu0
        %v675 = vadd.f32 0.0, %v674
        %676 = vmatmul.f32.gmra.mxu0 %v486
        %v677 = vpop.f32.mrf.mxu0
        %v678 = vadd.f32 0.0, %v677
        %679 = vmatmul.f32.gmra.mxu0 %v489
        %v680 = vpop.f32.mrf.mxu0
        %v681 = vadd.f32 0.0, %v680
        %682 = vmatmul.f32.gmra.mxu0 %v492
        %v683 = vpop.f32.mrf.mxu0
        %v684 = vadd.f32 0.0, %v683
        %685 = vmatmul.f32.gmra.mxu0 %v495
        %v686 = vpop.f32.mrf.mxu0
        %v687 = vadd.f32 0.0, %v686
        %688 = vmatmul.f32.gmra.mxu0 %v498
        %v689 = vpop.f32.mrf.mxu0
        %v690 = vadd.f32 0.0, %v689
        %691 = vmatmul.f32.gmra.mxu0 %v501
        %v692 = vpop.f32.mrf.mxu0
        %v693 = vadd.f32 0.0, %v692
        %694 = vdwg.mxu0
        %695 = vmatpush.msra.mxu0 %v566
        %696 = vmatpush.msra.mxu0 %v564
        %697 = vmatpush.msra.mxu0 %v562
        %698 = vmatpush.msra.mxu0 %v560
        %699 = vmatpush.msra.mxu0 %v558
        %700 = vmatpush.msra.mxu0 %v556
        %701 = vmatpush.msra.mxu0 %v554
        %702 = vmatpush.msra.mxu0 %v552
        %703 = vmatpush.msra.mxu0 %v550
        %704 = vmatpush.msra.mxu0 %v548
        %705 = vmatpush.msra.mxu0 %v546
        %706 = vmatpush.msra.mxu0 %v544
        %707 = vmatpush.msra.mxu0 %v542
        %708 = vmatpush.msra.mxu0 %v540
        %709 = vmatpush.msra.mxu0 %v538
        %710 = vmatpush.msra.mxu0 %v536
        %711 = vmatmul.f32.gmra.mxu0 %v427
        %v712 = vpop.f32.mrf.mxu0
        %v713 = vadd.f32 %v618, %v712
        %714 = vmatmul.f32.gmra.mxu0 %v430
        %v715 = vpop.f32.mrf.mxu0
        %v716 = vadd.f32 %v621, %v715
        %717 = vmatmul.f32.gmra.mxu0 %v433
        %v718 = vpop.f32.mrf.mxu0
        %v719 = vadd.f32 %v624, %v718
        %720 = vmatmul.f32.gmra.mxu0 %v436
        %v721 = vpop.f32.mrf.mxu0
        %v722 = vadd.f32 %v627, %v721
        %723 = vmatmul.f32.gmra.mxu0 %v439
        %v724 = vpop.f32.mrf.mxu0
        %v725 = vadd.f32 %v630, %v724
        %726 = vmatmul.f32.gmra.mxu0 %v442
        %v727 = vpop.f32.mrf.mxu0
        %v728 = vadd.f32 %v633, %v727
        %729 = vmatmul.f32.gmra.mxu0 %v445
        %v730 = vpop.f32.mrf.mxu0
        %v731 = vadd.f32 %v636, %v730
        %732 = vmatmul.f32.gmra.mxu0 %v448
        %v733 = vpop.f32.mrf.mxu0
        %v734 = vadd.f32 %v639, %v733
        %735 = vmatmul.f32.gmra.mxu0 %v451
        %v736 = vpop.f32.mrf.mxu0
        %v737 = vadd.f32 %v642, %v736
        %738 = vmatmul.f32.gmra.mxu0 %v454
        %v739 = vpop.f32.mrf.mxu0
        %v740 = vadd.f32 %v645, %v739
        %741 = vmatmul.f32.gmra.mxu0 %v457
        %v742 = vpop.f32.mrf.mxu0
        %v743 = vadd.f32 %v648, %v742
        %744 = vmatmul.f32.gmra.mxu0 %v460
        %v745 = vpop.f32.mrf.mxu0
        %v746 = vadd.f32 %v651, %v745
        %747 = vmatmul.f32.gmra.mxu0 %v463
        %v748 = vpop.f32.mrf.mxu0
        %v749 = vadd.f32 %v654, %v748
        %750 = vmatmul.f32.gmra.mxu0 %v466
        %v751 = vpop.f32.mrf.mxu0
        %v752 = vadd.f32 %v657, %v751
        %753 = vmatmul.f32.gmra.mxu0 %v469
        %v754 = vpop.f32.mrf.mxu0
        %v755 = vadd.f32 %v660, %v754
        %756 = vmatmul.f32.gmra.mxu0 %v472
        %v757 = vpop.f32.mrf.mxu0
        %v758 = vadd.f32 %v663, %v757
        %759 = vmatmul.f32.gmra.mxu0 %v475
        %v760 = vpop.f32.mrf.mxu0
        %v761 = vadd.f32 %v666, %v760
        %762 = vmatmul.f32.gmra.mxu0 %v478
        %v763 = vpop.f32.mrf.mxu0
        %v764 = vadd.f32 %v669, %v763
        %765 = vmatmul.f32.gmra.mxu0 %v481
        %v766 = vpop.f32.mrf.mxu0
        %v767 = vadd.f32 %v672, %v766
        %768 = vmatmul.f32.gmra.mxu0 %v484
        %v769 = vpop.f32.mrf.mxu0
        %v770 = vadd.f32 %v675, %v769
        %771 = vmatmul.f32.gmra.mxu0 %v487
        %v772 = vpop.f32.mrf.mxu0
        %v773 = vadd.f32 %v678, %v772
        %774 = vmatmul.f32.gmra.mxu0 %v490
        %v775 = vpop.f32.mrf.mxu0
        %v776 = vadd.f32 %v681, %v775
        %777 = vmatmul.f32.gmra.mxu0 %v493
        %v778 = vpop.f32.mrf.mxu0
        %v779 = vadd.f32 %v684, %v778
        %780 = vmatmul.f32.gmra.mxu0 %v496
        %v781 = vpop.f32.mrf.mxu0
        %v782 = vadd.f32 %v687, %v781
        %783 = vmatmul.f32.gmra.mxu0 %v499
        %v784 = vpop.f32.mrf.mxu0
        %v785 = vadd.f32 %v690, %v784
        %786 = vmatmul.f32.gmra.mxu0 %v502
        %v787 = vpop.f32.mrf.mxu0
        %v788 = vadd.f32 %v693, %v787
        %789 = vdwg.mxu0
        %790 = vmatpush.msra.mxu0 %v598
        %791 = vmatpush.msra.mxu0 %v596
        %792 = vmatpush.msra.mxu0 %v594
        %793 = vmatpush.msra.mxu0 %v592
        %794 = vmatpush.msra.mxu0 %v590
        %795 = vmatpush.msra.mxu0 %v588
        %796 = vmatpush.msra.mxu0 %v586
        %797 = vmatpush.msra.mxu0 %v584
        %798 = vmatpush.msra.mxu0 %v582
        %799 = vmatpush.msra.mxu0 %v580
        %800 = vmatpush.msra.mxu0 %v578
        %801 = vmatpush.msra.mxu0 %v576
        %802 = vmatpush.msra.mxu0 %v574
        %803 = vmatpush.msra.mxu0 %v572
        %804 = vmatpush.msra.mxu0 %v570
        %805 = vmatpush.msra.mxu0 %v568
        %806 = vmatmul.f32.gmra.mxu0 %v428
        %v807 = vpop.f32.mrf.mxu0
        %v808 = vadd.f32 %v713, %v807
        %809 = vmatmul.f32.gmra.mxu0 %v431
        %v810 = vpop.f32.mrf.mxu0
        %v811 = vadd.f32 %v716, %v810
        %812 = vmatmul.f32.gmra.mxu0 %v434
        %v813 = vpop.f32.mrf.mxu0
        %v814 = vadd.f32 %v719, %v813
        %815 = vmatmul.f32.gmra.mxu0 %v437
        %v816 = vpop.f32.mrf.mxu0
        %v817 = vadd.f32 %v722, %v816
        %818 = vmatmul.f32.gmra.mxu0 %v440
        %v819 = vpop.f32.mrf.mxu0
        %v820 = vadd.f32 %v725, %v819
        %821 = vmatmul.f32.gmra.mxu0 %v443
        %v822 = vpop.f32.mrf.mxu0
        %v823 = vadd.f32 %v728, %v822
        %824 = vmatmul.f32.gmra.mxu0 %v446
        %v825 = vpop.f32.mrf.mxu0
        %v826 = vadd.f32 %v731, %v825
        %827 = vmatmul.f32.gmra.mxu0 %v449
        %v828 = vpop.f32.mrf.mxu0
        %v829 = vadd.f32 %v734, %v828
        %830 = vmatmul.f32.gmra.mxu0 %v452
        %v831 = vpop.f32.mrf.mxu0
        %v832 = vadd.f32 %v737, %v831
        %833 = vmatmul.f32.gmra.mxu0 %v455
        %v834 = vpop.f32.mrf.mxu0
        %v835 = vadd.f32 %v740, %v834
        %836 = vmatmul.f32.gmra.mxu0 %v458
        %v837 = vpop.f32.mrf.mxu0
        %v838 = vadd.f32 %v743, %v837
        %839 = vmatmul.f32.gmra.mxu0 %v461
        %v840 = vpop.f32.mrf.mxu0
        %v841 = vadd.f32 %v746, %v840
        %842 = vmatmul.f32.gmra.mxu0 %v464
        %v843 = vpop.f32.mrf.mxu0
        %v844 = vadd.f32 %v749, %v843
        %845 = vmatmul.f32.gmra.mxu0 %v467
        %v846 = vpop.f32.mrf.mxu0
        %v847 = vadd.f32 %v752, %v846
        %848 = vmatmul.f32.gmra.mxu0 %v470
        %v849 = vpop.f32.mrf.mxu0
        %v850 = vadd.f32 %v755, %v849
        %851 = vmatmul.f32.gmra.mxu0 %v473
        %v852 = vpop.f32.mrf.mxu0
        %v853 = vadd.f32 %v758, %v852
        %854 = vmatmul.f32.gmra.mxu0 %v476
        %v855 = vpop.f32.mrf.mxu0
        %v856 = vadd.f32 %v761, %v855
        %857 = vmatmul.f32.gmra.mxu0 %v479
        %v858 = vpop.f32.mrf.mxu0
        %v859 = vadd.f32 %v764, %v858
        %860 = vmatmul.f32.gmra.mxu0 %v482
        %v861 = vpop.f32.mrf.mxu0
        %v862 = vadd.f32 %v767, %v861
        %863 = vmatmul.f32.gmra.mxu0 %v485
        %v864 = vpop.f32.mrf.mxu0
        %v865 = vadd.f32 %v770, %v864
        %866 = vmatmul.f32.gmra.mxu0 %v488
        %v867 = vpop.f32.mrf.mxu0
        %v868 = vadd.f32 %v773, %v867
        %869 = vmatmul.f32.gmra.mxu0 %v491
        %v870 = vpop.f32.mrf.mxu0
        %v871 = vadd.f32 %v776, %v870
        %872 = vmatmul.f32.gmra.mxu0 %v494
        %v873 = vpop.f32.mrf.mxu0
        %v874 = vadd.f32 %v779, %v873
        %875 = vmatmul.f32.gmra.mxu0 %v497
        %v876 = vpop.f32.mrf.mxu0
        %v877 = vadd.f32 %v782, %v876
        %878 = vmatmul.f32.gmra.mxu0 %v500
        %v879 = vpop.f32.mrf.mxu0
        %v880 = vadd.f32 %v785, %v879
        %881 = vmatmul.f32.gmra.mxu0 %v503
        %v882 = vpop.f32.mrf.mxu0
        %v883 = vadd.f32 %v788, %v882
        %884 = vdwg.mxu0
        %885 = vmatpush.msra.mxu0 %v535
        %886 = vmatpush.msra.mxu0 %v533
        %887 = vmatpush.msra.mxu0 %v531
        %888 = vmatpush.msra.mxu0 %v529
        %889 = vmatpush.msra.mxu0 %v527
        %890 = vmatpush.msra.mxu0 %v525
        %891 = vmatpush.msra.mxu0 %v523
        %892 = vmatpush.msra.mxu0 %v521
        %893 = vmatpush.msra.mxu0 %v519
        %894 = vmatpush.msra.mxu0 %v517
        %895 = vmatpush.msra.mxu0 %v515
        %896 = vmatpush.msra.mxu0 %v513
        %897 = vmatpush.msra.mxu0 %v511
        %898 = vmatpush.msra.mxu0 %v509
        %899 = vmatpush.msra.mxu0 %v507
        %900 = vmatpush.msra.mxu0 %v505
        %901 = vmatmul.f32.gmra.mxu0 %v426
        %v902 = vpop.f32.mrf.mxu0
        %v903 = vadd.f32 0.0, %v902
        %904 = vmatmul.f32.gmra.mxu0 %v429
        %v905 = vpop.f32.mrf.mxu0
        %v906 = vadd.f32 0.0, %v905
        %907 = vmatmul.f32.gmra.mxu0 %v432
        %v908 = vpop.f32.mrf.mxu0
        %v909 = vadd.f32 0.0, %v908
        %910 = vmatmul.f32.gmra.mxu0 %v435
        %v911 = vpop.f32.mrf.mxu0
        %v912 = vadd.f32 0.0, %v911
        %913 = vmatmul.f32.gmra.mxu0 %v438
        %v914 = vpop.f32.mrf.mxu0
        %v915 = vadd.f32 0.0, %v914
        %916 = vmatmul.f32.gmra.mxu0 %v441
        %v917 = vpop.f32.mrf.mxu0
        %v918 = vadd.f32 0.0, %v917
        %919 = vmatmul.f32.gmra.mxu0 %v444
        %v920 = vpop.f32.mrf.mxu0
        %v921 = vadd.f32 0.0, %v920
        %922 = vmatmul.f32.gmra.mxu0 %v447
        %v923 = vpop.f32.mrf.mxu0
        %v924 = vadd.f32 0.0, %v923
        %925 = vmatmul.f32.gmra.mxu0 %v450
        %v926 = vpop.f32.mrf.mxu0
        %v927 = vadd.f32 0.0, %v926
        %928 = vmatmul.f32.gmra.mxu0 %v453
        %v929 = vpop.f32.mrf.mxu0
        %v930 = vadd.f32 0.0, %v929
        %931 = vmatmul.f32.gmra.mxu0 %v456
        %v932 = vpop.f32.mrf.mxu0
        %v933 = vadd.f32 0.0, %v932
        %934 = vmatmul.f32.gmra.mxu0 %v459
        %v935 = vpop.f32.mrf.mxu0
        %v936 = vadd.f32 0.0, %v935
        %937 = vmatmul.f32.gmra.mxu0 %v462
        %v938 = vpop.f32.mrf.mxu0
        %v939 = vadd.f32 0.0, %v938
        %940 = vmatmul.f32.gmra.mxu0 %v465
        %v941 = vpop.f32.mrf.mxu0
        %v942 = vadd.f32 0.0, %v941
        %943 = vmatmul.f32.gmra.mxu0 %v468
        %v944 = vpop.f32.mrf.mxu0
        %v945 = vadd.f32 0.0, %v944
        %946 = vmatmul.f32.gmra.mxu0 %v471
        %v947 = vpop.f32.mrf.mxu0
        %v948 = vadd.f32 0.0, %v947
        %949 = vmatmul.f32.gmra.mxu0 %v474
        %v950 = vpop.f32.mrf.mxu0
        %v951 = vadd.f32 0.0, %v950
        %952 = vmatmul.f32.gmra.mxu0 %v477
        %v953 = vpop.f32.mrf.mxu0
        %v954 = vadd.f32 0.0, %v953
        %955 = vmatmul.f32.gmra.mxu0 %v480
        %v956 = vpop.f32.mrf.mxu0
        %v957 = vadd.f32 0.0, %v956
        %958 = vmatmul.f32.gmra.mxu0 %v483
        %v959 = vpop.f32.mrf.mxu0
        %v960 = vadd.f32 0.0, %v959
        %961 = vmatmul.f32.gmra.mxu0 %v486
        %v962 = vpop.f32.mrf.mxu0
        %v963 = vadd.f32 0.0, %v962
        %964 = vmatmul.f32.gmra.mxu0 %v489
        %v965 = vpop.f32.mrf.mxu0
        %v966 = vadd.f32 0.0, %v965
        %967 = vmatmul.f32.gmra.mxu0 %v492
        %v968 = vpop.f32.mrf.mxu0
        %v969 = vadd.f32 0.0, %v968
        %970 = vmatmul.f32.gmra.mxu0 %v495
        %v971 = vpop.f32.mrf.mxu0
        %v972 = vadd.f32 0.0, %v971
        %973 = vmatmul.f32.gmra.mxu0 %v498
        %v974 = vpop.f32.mrf.mxu0
        %v975 = vadd.f32 0.0, %v974
        %976 = vmatmul.f32.gmra.mxu0 %v501
        %v977 = vpop.f32.mrf.mxu0
        %v978 = vadd.f32 0.0, %v977
        %979 = vdwg.mxu0
        %980 = vmatpush.msra.mxu0 %v567
        %981 = vmatpush.msra.mxu0 %v565
        %982 = vmatpush.msra.mxu0 %v563
        %983 = vmatpush.msra.mxu0 %v561
        %984 = vmatpush.msra.mxu0 %v559
        %985 = vmatpush.msra.mxu0 %v557
        %986 = vmatpush.msra.mxu0 %v555
        %987 = vmatpush.msra.mxu0 %v553
        %988 = vmatpush.msra.mxu0 %v551
        %989 = vmatpush.msra.mxu0 %v549
        %990 = vmatpush.msra.mxu0 %v547
        %991 = vmatpush.msra.mxu0 %v545
        %992 = vmatpush.msra.mxu0 %v543
        %993 = vmatpush.msra.mxu0 %v541
        %994 = vmatpush.msra.mxu0 %v539
        %995 = vmatpush.msra.mxu0 %v537
        %996 = vmatmul.f32.gmra.mxu0 %v427
        %v997 = vpop.f32.mrf.mxu0
        %v998 = vadd.f32 %v903, %v997
        %999 = vmatmul.f32.gmra.mxu0 %v430
        %v1000 = vpop.f32.mrf.mxu0
        %v1001 = vadd.f32 %v906, %v1000
        %1002 = vmatmul.f32.gmra.mxu0 %v433
        %v1003 = vpop.f32.mrf.mxu0
        %v1004 = vadd.f32 %v909, %v1003
        %1005 = vmatmul.f32.gmra.mxu0 %v436
        %v1006 = vpop.f32.mrf.mxu0
        %v1007 = vadd.f32 %v912, %v1006
        %1008 = vmatmul.f32.gmra.mxu0 %v439
        %v1009 = vpop.f32.mrf.mxu0
        %v1010 = vadd.f32 %v915, %v1009
        %1011 = vmatmul.f32.gmra.mxu0 %v442
        %v1012 = vpop.f32.mrf.mxu0
        %v1013 = vadd.f32 %v918, %v1012
        %1014 = vmatmul.f32.gmra.mxu0 %v445
        %v1015 = vpop.f32.mrf.mxu0
        %v1016 = vadd.f32 %v921, %v1015
        %1017 = vmatmul.f32.gmra.mxu0 %v448
        %v1018 = vpop.f32.mrf.mxu0
        %v1019 = vadd.f32 %v924, %v1018
        %1020 = vmatmul.f32.gmra.mxu0 %v451
        %v1021 = vpop.f32.mrf.mxu0
        %v1022 = vadd.f32 %v927, %v1021
        %1023 = vmatmul.f32.gmra.mxu0 %v454
        %v1024 = vpop.f32.mrf.mxu0
        %v1025 = vadd.f32 %v930, %v1024
        %1026 = vmatmul.f32.gmra.mxu0 %v457
        %v1027 = vpop.f32.mrf.mxu0
        %v1028 = vadd.f32 %v933, %v1027
        %1029 = vmatmul.f32.gmra.mxu0 %v460
        %v1030 = vpop.f32.mrf.mxu0
        %v1031 = vadd.f32 %v936, %v1030
        %1032 = vmatmul.f32.gmra.mxu0 %v463
        %v1033 = vpop.f32.mrf.mxu0
        %v1034 = vadd.f32 %v939, %v1033
        %1035 = vmatmul.f32.gmra.mxu0 %v466
        %v1036 = vpop.f32.mrf.mxu0
        %v1037 = vadd.f32 %v942, %v1036
        %1038 = vmatmul.f32.gmra.mxu0 %v469
        %v1039 = vpop.f32.mrf.mxu0
        %v1040 = vadd.f32 %v945, %v1039
        %1041 = vmatmul.f32.gmra.mxu0 %v472
        %v1042 = vpop.f32.mrf.mxu0
        %v1043 = vadd.f32 %v948, %v1042
        %1044 = vmatmul.f32.gmra.mxu0 %v475
        %v1045 = vpop.f32.mrf.mxu0
        %v1046 = vadd.f32 %v951, %v1045
        %1047 = vmatmul.f32.gmra.mxu0 %v478
        %v1048 = vpop.f32.mrf.mxu0
        %v1049 = vadd.f32 %v954, %v1048
        %1050 = vmatmul.f32.gmra.mxu0 %v481
        %v1051 = vpop.f32.mrf.mxu0
        %v1052 = vadd.f32 %v957, %v1051
        %1053 = vmatmul.f32.gmra.mxu0 %v484
        %v1054 = vpop.f32.mrf.mxu0
        %v1055 = vadd.f32 %v960, %v1054
        %1056 = vmatmul.f32.gmra.mxu0 %v487
        %v1057 = vpop.f32.mrf.mxu0
        %v1058 = vadd.f32 %v963, %v1057
        %1059 = vmatmul.f32.gmra.mxu0 %v490
        %v1060 = vpop.f32.mrf.mxu0
        %v1061 = vadd.f32 %v966, %v1060
        %1062 = vmatmul.f32.gmra.mxu0 %v493
        %v1063 = vpop.f32.mrf.mxu0
        %v1064 = vadd.f32 %v969, %v1063
        %1065 = vmatmul.f32.gmra.mxu0 %v496
        %v1066 = vpop.f32.mrf.mxu0
        %v1067 = vadd.f32 %v972, %v1066
        %1068 = vmatmul.f32.gmra.mxu0 %v499
        %v1069 = vpop.f32.mrf.mxu0
        %v1070 = vadd.f32 %v975, %v1069
        %1071 = vmatmul.f32.gmra.mxu0 %v502
        %v1072 = vpop.f32.mrf.mxu0
        %v1073 = vadd.f32 %v978, %v1072
        %1074 = vdwg.mxu0
        %1075 = vmatpush.msra.mxu0 %v599
        %1076 = vmatpush.msra.mxu0 %v597
        %1077 = vmatpush.msra.mxu0 %v595
        %1078 = vmatpush.msra.mxu0 %v593
        %1079 = vmatpush.msra.mxu0 %v591
        %1080 = vmatpush.msra.mxu0 %v589
        %1081 = vmatpush.msra.mxu0 %v587
        %1082 = vmatpush.msra.mxu0 %v585
        %1083 = vmatpush.msra.mxu0 %v583
        %1084 = vmatpush.msra.mxu0 %v581
        %1085 = vmatpush.msra.mxu0 %v579
        %1086 = vmatpush.msra.mxu0 %v577
        %1087 = vmatpush.msra.mxu0 %v575
        %1088 = vmatpush.msra.mxu0 %v573
        %1089 = vmatpush.msra.mxu0 %v571
        %1090 = vmatpush.msra.mxu0 %v569
        %1091 = vmatmul.f32.gmra.mxu0 %v428
        %v1092 = vpop.f32.mrf.mxu0
        %v1093 = vadd.f32 %v998, %v1092
        %1094 = vmatmul.f32.gmra.mxu0 %v431
        %v1095 = vpop.f32.mrf.mxu0
        %v1096 = vadd.f32 %v1001, %v1095
        %1097 = vmatmul.f32.gmra.mxu0 %v434
        %v1098 = vpop.f32.mrf.mxu0
        %v1099 = vadd.f32 %v1004, %v1098
        %1100 = vmatmul.f32.gmra.mxu0 %v437
        %v1101 = vpop.f32.mrf.mxu0
        %v1102 = vadd.f32 %v1007, %v1101
        %1103 = vmatmul.f32.gmra.mxu0 %v440
        %v1104 = vpop.f32.mrf.mxu0
        %v1105 = vadd.f32 %v1010, %v1104
        %1106 = vmatmul.f32.gmra.mxu0 %v443
        %v1107 = vpop.f32.mrf.mxu0
        %v1108 = vadd.f32 %v1013, %v1107
        %1109 = vmatmul.f32.gmra.mxu0 %v446
        %v1110 = vpop.f32.mrf.mxu0
        %v1111 = vadd.f32 %v1016, %v1110
        %1112 = vmatmul.f32.gmra.mxu0 %v449
        %v1113 = vpop.f32.mrf.mxu0
        %v1114 = vadd.f32 %v1019, %v1113
        %1115 = vmatmul.f32.gmra.mxu0 %v452
        %v1116 = vpop.f32.mrf.mxu0
        %v1117 = vadd.f32 %v1022, %v1116
        %1118 = vmatmul.f32.gmra.mxu0 %v455
        %v1119 = vpop.f32.mrf.mxu0
        %v1120 = vadd.f32 %v1025, %v1119
        %1121 = vmatmul.f32.gmra.mxu0 %v458
        %v1122 = vpop.f32.mrf.mxu0
        %v1123 = vadd.f32 %v1028, %v1122
        %1124 = vmatmul.f32.gmra.mxu0 %v461
        %v1125 = vpop.f32.mrf.mxu0
        %v1126 = vadd.f32 %v1031, %v1125
        %1127 = vmatmul.f32.gmra.mxu0 %v464
        %v1128 = vpop.f32.mrf.mxu0
        %v1129 = vadd.f32 %v1034, %v1128
        %1130 = vmatmul.f32.gmra.mxu0 %v467
        %v1131 = vpop.f32.mrf.mxu0
        %v1132 = vadd.f32 %v1037, %v1131
        %1133 = vmatmul.f32.gmra.mxu0 %v470
        %v1134 = vpop.f32.mrf.mxu0
        %v1135 = vadd.f32 %v1040, %v1134
        %1136 = vmatmul.f32.gmra.mxu0 %v473
        %v1137 = vpop.f32.mrf.mxu0
        %v1138 = vadd.f32 %v1043, %v1137
        %1139 = vmatmul.f32.gmra.mxu0 %v476
        %v1140 = vpop.f32.mrf.mxu0
        %v1141 = vadd.f32 %v1046, %v1140
        %1142 = vmatmul.f32.gmra.mxu0 %v479
        %v1143 = vpop.f32.mrf.mxu0
        %v1144 = vadd.f32 %v1049, %v1143
        %1145 = vmatmul.f32.gmra.mxu0 %v482
        %v1146 = vpop.f32.mrf.mxu0
        %v1147 = vadd.f32 %v1052, %v1146
        %1148 = vmatmul.f32.gmra.mxu0 %v485
        %v1149 = vpop.f32.mrf.mxu0
        %v1150 = vadd.f32 %v1055, %v1149
        %1151 = vmatmul.f32.gmra.mxu0 %v488
        %v1152 = vpop.f32.mrf.mxu0
        %v1153 = vadd.f32 %v1058, %v1152
        %1154 = vmatmul.f32.gmra.mxu0 %v491
        %v1155 = vpop.f32.mrf.mxu0
        %v1156 = vadd.f32 %v1061, %v1155
        %1157 = vmatmul.f32.gmra.mxu0 %v494
        %v1158 = vpop.f32.mrf.mxu0
        %v1159 = vadd.f32 %v1064, %v1158
        %1160 = vmatmul.f32.gmra.mxu0 %v497
        %v1161 = vpop.f32.mrf.mxu0
        %v1162 = vadd.f32 %v1067, %v1161
        %1163 = vmatmul.f32.gmra.mxu0 %v500
        %v1164 = vpop.f32.mrf.mxu0
        %v1165 = vadd.f32 %v1070, %v1164
        %1166 = vmatmul.f32.gmra.mxu0 %v503
        %v1167 = vpop.f32.mrf.mxu0
        %v1168 = vadd.f32 %v1073, %v1167
        %1169 = vdwg.mxu0
        %v1170 = vadd.f32 %v374, %v808
        %v1171 = vadd.f32 %v375, %v1093
        %v1172 = vadd.f32 %v376, %v811
        %v1173 = vadd.f32 %v377, %v1096
        %v1174 = vadd.f32 %v378, %v814
        %v1175 = vadd.f32 %v379, %v1099
        %v1176 = vadd.f32 %v380, %v817
        %v1177 = vadd.f32 %v381, %v1102
        %v1178 = vadd.f32 %v382, %v820
        %v1179 = vadd.f32 %v383, %v1105
        %v1180 = vadd.f32 %v384, %v823
        %v1181 = vadd.f32 %v385, %v1108
        %v1182 = vadd.f32 %v386, %v826
        %v1183 = vadd.f32 %v387, %v1111
        %v1184 = vadd.f32 %v388, %v829
        %v1185 = vadd.f32 %v389, %v1114
        %v1186 = vadd.f32 %v390, %v832
        %v1187 = vadd.f32 %v391, %v1117
        %v1188 = vadd.f32 %v392, %v835
        %v1189 = vadd.f32 %v393, %v1120
        %v1190 = vadd.f32 %v394, %v838
        %v1191 = vadd.f32 %v395, %v1123
        %v1192 = vadd.f32 %v396, %v841
        %v1193 = vadd.f32 %v397, %v1126
        %v1194 = vadd.f32 %v398, %v844
        %v1195 = vadd.f32 %v399, %v1129
        %v1196 = vadd.f32 %v400, %v847
        %v1197 = vadd.f32 %v401, %v1132
        %v1198 = vadd.f32 %v402, %v850
        %v1199 = vadd.f32 %v403, %v1135
        %v1200 = vadd.f32 %v404, %v853
        %v1201 = vadd.f32 %v405, %v1138
        %v1202 = vadd.f32 %v406, %v856
        %v1203 = vadd.f32 %v407, %v1141
        %v1204 = vadd.f32 %v408, %v859
        %v1205 = vadd.f32 %v409, %v1144
        %v1206 = vadd.f32 %v410, %v862
        %v1207 = vadd.f32 %v411, %v1147
        %v1208 = vadd.f32 %v412, %v865
        %v1209 = vadd.f32 %v413, %v1150
        %v1210 = vadd.f32 %v414, %v868
        %v1211 = vadd.f32 %v415, %v1153
        %v1212 = vadd.f32 %v416, %v871
        %v1213 = vadd.f32 %v417, %v1156
        %v1214 = vadd.f32 %v418, %v874
        %v1215 = vadd.f32 %v419, %v1159
        %v1216 = vadd.f32 %v420, %v877
        %v1217 = vadd.f32 %v421, %v1162
        %v1218 = vadd.f32 %v422, %v880
        %v1219 = vadd.f32 %v423, %v1165
        %v1220 = vadd.f32 %v424, %v883
        %v1221 = vadd.f32 %v425, %v1168
        %1222 = vst [vmem:[%s310] sm:$0xff] %v1170
        %1223 = vst [vmem:[%s310 + $0x8] sm:$0xff] %v1171
        %1224 = vst [vmem:[%s310 + $0x10] sm:$0xff] %v1172
        %1225 = vst [vmem:[%s310 + $0x18] sm:$0xff] %v1173
        %1226 = vst [vmem:[%s310 + $0x20] sm:$0xff] %v1174
        %1227 = vst [vmem:[%s310 + $0x28] sm:$0xff] %v1175
        %1228 = vst [vmem:[%s310 + $0x30] sm:$0xff] %v1176
        %1229 = vst [vmem:[%s310 + $0x38] sm:$0xff] %v1177
        %1230 = vst [vmem:[%s310 + $0x40] sm:$0xff] %v1178
        %1231 = vst [vmem:[%s310 + $0x48] sm:$0xff] %v1179
        %1232 = vst [vmem:[%s310 + $0x50] sm:$0xff] %v1180
        %1233 = vst [vmem:[%s310 + $0x58] sm:$0xff] %v1181
        %1234 = vst [vmem:[%s310 + $0x60] sm:$0xff] %v1182
        %1235 = vst [vmem:[%s310 + $0x68] sm:$0xff] %v1183
        %1236 = vst [vmem:[%s310 + $0x70] sm:$0xff] %v1184
        %1237 = vst [vmem:[%s310 + $0x78] sm:$0xff] %v1185
        %1238 = vst [vmem:[%s310 + $0x80] sm:$0xff] %v1186
        %1239 = vst [vmem:[%s310 + $0x88] sm:$0xff] %v1187
        %1240 = vst [vmem:[%s310 + $0x90] sm:$0xff] %v1188
        %1241 = vst [vmem:[%s310 + $0x98] sm:$0xff] %v1189
        %1242 = vst [vmem:[%s310 + $0xa0] sm:$0xff] %v1190
        %1243 = vst [vmem:[%s310 + $0xa8] sm:$0xff] %v1191
        %1244 = vst [vmem:[%s310 + $0xb0] sm:$0xff] %v1192
        %1245 = vst [vmem:[%s310 + $0xb8] sm:$0xff] %v1193
        %1246 = vst [vmem:[%s310 + $0xc0] sm:$0xff] %v1194
        %1247 = vst [vmem:[%s310 + $0xc8] sm:$0xff] %v1195
        %1248 = vst [vmem:[%s310 + $0xd0] sm:$0xff] %v1196
        %1249 = vst [vmem:[%s310 + $0xd8] sm:$0xff] %v1197
        %1250 = vst [vmem:[%s310 + $0xe0] sm:$0xff] %v1198
        %1251 = vst [vmem:[%s310 + $0xe8] sm:$0xff] %v1199
        %1252 = vst [vmem:[%s310 + $0xf0] sm:$0xff] %v1200
        %1253 = vst [vmem:[%s310 + $0xf8] sm:$0xff] %v1201
        %1254 = vst [vmem:[%s310 + $0x100] sm:$0xff] %v1202
        %1255 = vst [vmem:[%s310 + $0x108] sm:$0xff] %v1203
        %1256 = vst [vmem:[%s310 + $0x110] sm:$0xff] %v1204
        %1257 = vst [vmem:[%s310 + $0x118] sm:$0xff] %v1205
        %1258 = vst [vmem:[%s310 + $0x120] sm:$0xff] %v1206
        %1259 = vst [vmem:[%s310 + $0x128] sm:$0xff] %v1207
        %1260 = vst [vmem:[%s310 + $0x130] sm:$0xff] %v1208
        %1261 = vst [vmem:[%s310 + $0x138] sm:$0xff] %v1209
        %1262 = vst [vmem:[%s310 + $0x140] sm:$0xff] %v1210
        %1263 = vst [vmem:[%s310 + $0x148] sm:$0xff] %v1211
        %1264 = vst [vmem:[%s310 + $0x150] sm:$0xff] %v1212
        %1265 = vst [vmem:[%s310 + $0x158] sm:$0xff] %v1213
        %1266 = vst [vmem:[%s310 + $0x160] sm:$0xff] %v1214
        %1267 = vst [vmem:[%s310 + $0x168] sm:$0xff] %v1215
        %1268 = vst [vmem:[%s310 + $0x170] sm:$0xff] %v1216
        %1269 = vst [vmem:[%s310 + $0x178] sm:$0xff] %v1217
        %1270 = vst [vmem:[%s310 + $0x180] sm:$0xff] %v1218
        %1271 = vst [vmem:[%s310 + $0x188] sm:$0xff] %v1219
        %1272 = vst [vmem:[%s310 + $0x190] sm:$0xff] %v1220
        %1273 = vst [vmem:[%s310 + $0x198] sm:$0xff] %v1221
        // Predicated region
        $region53: #{tpu_custom_call.1} parent=35 // pred_check
          %p1274 = pneg %p318
        $region54: #{tpu_custom_call.1} parent=35 // pred_check_branch
          %1276 = sbr.rel (%p1274) target = $region56
        $region55: #{tpu_custom_call.1} parent=35 // pred_region
          %s1277 = sld [smem:[#allocation2]]
          %v1278 = vld [vmem:[%s310] sm:$0xff]
          %v1279 = vld [vmem:[%s310 + $0x8] sm:$0xff]
          %v1280 = vld [vmem:[%s310 + $0x10] sm:$0xff]
          %v1281 = vld [vmem:[%s310 + $0x18] sm:$0xff]
          %v1282 = vld [vmem:[%s310 + $0x20] sm:$0xff]
          %v1283 = vld [vmem:[%s310 + $0x28] sm:$0xff]
          %v1284 = vld [vmem:[%s310 + $0x30] sm:$0xff]
          %v1285 = vld [vmem:[%s310 + $0x38] sm:$0xff]
          %v1286 = vld [vmem:[%s310 + $0x40] sm:$0xff]
          %v1287 = vld [vmem:[%s310 + $0x48] sm:$0xff]
          %v1288 = vld [vmem:[%s310 + $0x50] sm:$0xff]
          %v1289 = vld [vmem:[%s310 + $0x58] sm:$0xff]
          %v1290 = vld [vmem:[%s310 + $0x60] sm:$0xff]
          %v1291 = vld [vmem:[%s310 + $0x68] sm:$0xff]
          %v1292 = vld [vmem:[%s310 + $0x70] sm:$0xff]
          %v1293 = vld [vmem:[%s310 + $0x78] sm:$0xff]
          %v1294 = vld [vmem:[%s310 + $0x80] sm:$0xff]
          %v1295 = vld [vmem:[%s310 + $0x88] sm:$0xff]
          %v1296 = vld [vmem:[%s310 + $0x90] sm:$0xff]
          %v1297 = vld [vmem:[%s310 + $0x98] sm:$0xff]
          %v1298 = vld [vmem:[%s310 + $0xa0] sm:$0xff]
          %v1299 = vld [vmem:[%s310 + $0xa8] sm:$0xff]
          %v1300 = vld [vmem:[%s310 + $0xb0] sm:$0xff]
          %v1301 = vld [vmem:[%s310 + $0xb8] sm:$0xff]
          %v1302 = vld [vmem:[%s310 + $0xc0] sm:$0xff]
          %v1303 = vld [vmem:[%s310 + $0xc8] sm:$0xff]
          %v1304 = vld [vmem:[%s310 + $0xd0] sm:$0xff]
          %v1305 = vld [vmem:[%s310 + $0xd8] sm:$0xff]
          %v1306 = vld [vmem:[%s310 + $0xe0] sm:$0xff]
          %v1307 = vld [vmem:[%s310 + $0xe8] sm:$0xff]
          %v1308 = vld [vmem:[%s310 + $0xf0] sm:$0xff]
          %v1309 = vld [vmem:[%s310 + $0xf8] sm:$0xff]
          %v1310 = vld [vmem:[%s310 + $0x100] sm:$0xff]
          %v1311 = vld [vmem:[%s310 + $0x108] sm:$0xff]
          %v1312 = vld [vmem:[%s310 + $0x110] sm:$0xff]
          %v1313 = vld [vmem:[%s310 + $0x118] sm:$0xff]
          %v1314 = vld [vmem:[%s310 + $0x120] sm:$0xff]
          %v1315 = vld [vmem:[%s310 + $0x128] sm:$0xff]
          %v1316 = vld [vmem:[%s310 + $0x130] sm:$0xff]
          %v1317 = vld [vmem:[%s310 + $0x138] sm:$0xff]
          %v1318 = vld [vmem:[%s310 + $0x140] sm:$0xff]
          %v1319 = vld [vmem:[%s310 + $0x148] sm:$0xff]
          %v1320 = vld [vmem:[%s310 + $0x150] sm:$0xff]
          %v1321 = vld [vmem:[%s310 + $0x158] sm:$0xff]
          %v1322 = vld [vmem:[%s310 + $0x160] sm:$0xff]
          %v1323 = vld [vmem:[%s310 + $0x168] sm:$0xff]
          %v1324 = vld [vmem:[%s310 + $0x170] sm:$0xff]
          %v1325 = vld [vmem:[%s310 + $0x178] sm:$0xff]
          %v1326 = vld [vmem:[%s310 + $0x180] sm:$0xff]
          %v1327 = vld [vmem:[%s310 + $0x188] sm:$0xff]
          %v1328 = vld [vmem:[%s310 + $0x190] sm:$0xff]
          %v1329 = vld [vmem:[%s310 + $0x198] sm:$0xff]
          %v1330 = vstv %s1277
          %v1331 = vmul.f32 %v1278, %v1330
          %v1332 = vmul.f32 %v1279, %v1330
          %v1333 = vmul.f32 %v1280, %v1330
          %v1334 = vmul.f32 %v1281, %v1330
          %v1335 = vmul.f32 %v1282, %v1330
          %v1336 = vmul.f32 %v1283, %v1330
          %v1337 = vmul.f32 %v1284, %v1330
          %v1338 = vmul.f32 %v1285, %v1330
          %v1339 = vmul.f32 %v1286, %v1330
          %v1340 = vmul.f32 %v1287, %v1330
          %v1341 = vmul.f32 %v1288, %v1330
          %v1342 = vmul.f32 %v1289, %v1330
          %v1343 = vmul.f32 %v1290, %v1330
          %v1344 = vmul.f32 %v1291, %v1330
          %v1345 = vmul.f32 %v1292, %v1330
          %v1346 = vmul.f32 %v1293, %v1330
          %v1347 = vmul.f32 %v1294, %v1330
          %v1348 = vmul.f32 %v1295, %v1330
          %v1349 = vmul.f32 %v1296, %v1330
          %v1350 = vmul.f32 %v1297, %v1330
          %v1351 = vmul.f32 %v1298, %v1330
          %v1352 = vmul.f32 %v1299, %v1330
          %v1353 = vmul.f32 %v1300, %v1330
          %v1354 = vmul.f32 %v1301, %v1330
          %v1355 = vmul.f32 %v1302, %v1330
          %v1356 = vmul.f32 %v1303, %v1330
          %v1357 = vmul.f32 %v1304, %v1330
          %v1358 = vmul.f32 %v1305, %v1330
          %v1359 = vmul.f32 %v1306, %v1330
          %v1360 = vmul.f32 %v1307, %v1330
          %v1361 = vmul.f32 %v1308, %v1330
          %v1362 = vmul.f32 %v1309, %v1330
          %v1363 = vmul.f32 %v1310, %v1330
          %v1364 = vmul.f32 %v1311, %v1330
          %v1365 = vmul.f32 %v1312, %v1330
          %v1366 = vmul.f32 %v1313, %v1330
          %v1367 = vmul.f32 %v1314, %v1330
          %v1368 = vmul.f32 %v1315, %v1330
          %v1369 = vmul.f32 %v1316, %v1330
          %v1370 = vmul.f32 %v1317, %v1330
          %v1371 = vmul.f32 %v1318, %v1330
          %v1372 = vmul.f32 %v1319, %v1330
          %v1373 = vmul.f32 %v1320, %v1330
          %v1374 = vmul.f32 %v1321, %v1330
          %v1375 = vmul.f32 %v1322, %v1330
          %v1376 = vmul.f32 %v1323, %v1330
          %v1377 = vmul.f32 %v1324, %v1330
          %v1378 = vmul.f32 %v1325, %v1330
          %v1379 = vmul.f32 %v1326, %v1330
          %v1380 = vmul.f32 %v1327, %v1330
          %v1381 = vmul.f32 %v1328, %v1330
          %v1382 = vmul.f32 %v1329, %v1330
          %v1383 = vld [vmem:[%s280] sm:$0x3]
          %v1385 = vperm.slane %v1383, 0
          %v1386 = vperm.slane %v1383, 1
          %v1389 = vadd.f32 %v1331, %v1385
          %v1390 = vadd.f32 %v1332, %v1386
          %v1391 = vadd.f32 %v1333, %v1385
          %v1392 = vadd.f32 %v1334, %v1386
          %v1393 = vadd.f32 %v1335, %v1385
          %v1394 = vadd.f32 %v1336, %v1386
          %v1395 = vadd.f32 %v1337, %v1385
          %v1396 = vadd.f32 %v1338, %v1386
          %v1397 = vadd.f32 %v1339, %v1385
          %v1398 = vadd.f32 %v1340, %v1386
          %v1399 = vadd.f32 %v1341, %v1385
          %v1400 = vadd.f32 %v1342, %v1386
          %v1401 = vadd.f32 %v1343, %v1385
          %v1402 = vadd.f32 %v1344, %v1386
          %v1403 = vadd.f32 %v1345, %v1385
          %v1404 = vadd.f32 %v1346, %v1386
          %v1405 = vadd.f32 %v1347, %v1385
          %v1406 = vadd.f32 %v1348, %v1386
          %v1407 = vadd.f32 %v1349, %v1385
          %v1408 = vadd.f32 %v1350, %v1386
          %v1409 = vadd.f32 %v1351, %v1385
          %v1410 = vadd.f32 %v1352, %v1386
          %v1411 = vadd.f32 %v1353, %v1385
          %v1412 = vadd.f32 %v1354, %v1386
          %v1413 = vadd.f32 %v1355, %v1385
          %v1414 = vadd.f32 %v1356, %v1386
          %v1415 = vadd.f32 %v1357, %v1385
          %v1416 = vadd.f32 %v1358, %v1386
          %v1417 = vadd.f32 %v1359, %v1385
          %v1418 = vadd.f32 %v1360, %v1386
          %v1419 = vadd.f32 %v1361, %v1385
          %v1420 = vadd.f32 %v1362, %v1386
          %v1421 = vadd.f32 %v1363, %v1385
          %v1422 = vadd.f32 %v1364, %v1386
          %v1423 = vadd.f32 %v1365, %v1385
          %v1424 = vadd.f32 %v1366, %v1386
          %v1425 = vadd.f32 %v1367, %v1385
          %v1426 = vadd.f32 %v1368, %v1386
          %v1427 = vadd.f32 %v1369, %v1385
          %v1428 = vadd.f32 %v1370, %v1386
          %v1429 = vadd.f32 %v1371, %v1385
          %v1430 = vadd.f32 %v1372, %v1386
          %v1431 = vadd.f32 %v1373, %v1385
          %v1432 = vadd.f32 %v1374, %v1386
          %v1433 = vadd.f32 %v1375, %v1385
          %v1434 = vadd.f32 %v1376, %v1386
          %v1435 = vadd.f32 %v1377, %v1385
          %v1436 = vadd.f32 %v1378, %v1386
          %v1437 = vadd.f32 %v1379, %v1385
          %v1438 = vadd.f32 %v1380, %v1386
          %v1439 = vadd.f32 %v1381, %v1385
          %v1440 = vadd.f32 %v1382, %v1386
          %v1441 = vxor.u32 %v1389, 2147483648
          %v1442 = vxor.u32 %v1390, 2147483648
          %v1443 = vxor.u32 %v1391, 2147483648
          %v1444 = vxor.u32 %v1392, 2147483648
          %v1445 = vxor.u32 %v1393, 2147483648
          %v1446 = vxor.u32 %v1394, 2147483648
          %v1447 = vxor.u32 %v1395, 2147483648
          %v1448 = vxor.u32 %v1396, 2147483648
          %v1449 = vxor.u32 %v1397, 2147483648
          %v1450 = vxor.u32 %v1398, 2147483648
          %v1451 = vxor.u32 %v1399, 2147483648
          %v1452 = vxor.u32 %v1400, 2147483648
          %v1453 = vxor.u32 %v1401, 2147483648
          %v1454 = vxor.u32 %v1402, 2147483648
          %v1455 = vxor.u32 %v1403, 2147483648
          %v1456 = vxor.u32 %v1404, 2147483648
          %v1457 = vxor.u32 %v1405, 2147483648
          %v1458 = vxor.u32 %v1406, 2147483648
          %v1459 = vxor.u32 %v1407, 2147483648
          %v1460 = vxor.u32 %v1408, 2147483648
          %v1461 = vxor.u32 %v1409, 2147483648
          %v1462 = vxor.u32 %v1410, 2147483648
          %v1463 = vxor.u32 %v1411, 2147483648
          %v1464 = vxor.u32 %v1412, 2147483648
          %v1465 = vxor.u32 %v1413, 2147483648
          %v1466 = vxor.u32 %v1414, 2147483648
          %v1467 = vxor.u32 %v1415, 2147483648
          %v1468 = vxor.u32 %v1416, 2147483648
          %v1469 = vxor.u32 %v1417, 2147483648
          %v1470 = vxor.u32 %v1418, 2147483648
          %v1471 = vxor.u32 %v1419, 2147483648
          %v1472 = vxor.u32 %v1420, 2147483648
          %v1473 = vxor.u32 %v1421, 2147483648
          %v1474 = vxor.u32 %v1422, 2147483648
          %v1475 = vxor.u32 %v1423, 2147483648
          %v1476 = vxor.u32 %v1424, 2147483648
          %v1477 = vxor.u32 %v1425, 2147483648
          %v1478 = vxor.u32 %v1426, 2147483648
          %v1479 = vxor.u32 %v1427, 2147483648
          %v1480 = vxor.u32 %v1428, 2147483648
          %v1481 = vxor.u32 %v1429, 2147483648
          %v1482 = vxor.u32 %v1430, 2147483648
          %v1483 = vxor.u32 %v1431, 2147483648
          %v1484 = vxor.u32 %v1432, 2147483648
          %v1485 = vxor.u32 %v1433, 2147483648
          %v1486 = vxor.u32 %v1434, 2147483648
          %v1487 = vxor.u32 %v1435, 2147483648
          %v1488 = vxor.u32 %v1436, 2147483648
          %v1489 = vxor.u32 %v1437, 2147483648
          %v1490 = vxor.u32 %v1438, 2147483648
          %v1491 = vxor.u32 %v1439, 2147483648
          %v1492 = vxor.u32 %v1440, 2147483648
          %v1493 = vmul.f32 %v1441, 1.442695
          %v1494 = vpow.pop %v1493
          %v1495 = vmul.f32 %v1442, 1.442695
          %v1496 = vpow.pop %v1495
          %v1497 = vmul.f32 %v1443, 1.442695
          %v1498 = vpow.pop %v1497
          %v1499 = vmul.f32 %v1444, 1.442695
          %v1500 = vpow.pop %v1499
          %v1501 = vmul.f32 %v1445, 1.442695
          %v1502 = vpow.pop %v1501
          %v1503 = vmul.f32 %v1446, 1.442695
          %v1504 = vpow.pop %v1503
          %v1505 = vmul.f32 %v1447, 1.442695
          %v1506 = vpow.pop %v1505
          %v1507 = vmul.f32 %v1448, 1.442695
          %v1508 = vpow.pop %v1507
          %v1509 = vmul.f32 %v1449, 1.442695
          %v1510 = vpow.pop %v1509
          %v1511 = vmul.f32 %v1450, 1.442695
          %v1512 = vpow.pop %v1511
          %v1513 = vmul.f32 %v1451, 1.442695
          %v1514 = vpow.pop %v1513
          %v1515 = vmul.f32 %v1452, 1.442695
          %v1516 = vpow.pop %v1515
          %v1517 = vmul.f32 %v1453, 1.442695
          %v1518 = vpow.pop %v1517
          %v1519 = vmul.f32 %v1454, 1.442695
          %v1520 = vpow.pop %v1519
          %v1521 = vmul.f32 %v1455, 1.442695
          %v1522 = vpow.pop %v1521
          %v1523 = vmul.f32 %v1456, 1.442695
          %v1524 = vpow.pop %v1523
          %v1525 = vmul.f32 %v1457, 1.442695
          %v1526 = vpow.pop %v1525
          %v1527 = vmul.f32 %v1458, 1.442695
          %v1528 = vpow.pop %v1527
          %v1529 = vmul.f32 %v1459, 1.442695
          %v1530 = vpow.pop %v1529
          %v1531 = vmul.f32 %v1460, 1.442695
          %v1532 = vpow.pop %v1531
          %v1533 = vmul.f32 %v1461, 1.442695
          %v1534 = vpow.pop %v1533
          %v1535 = vmul.f32 %v1462, 1.442695
          %v1536 = vpow.pop %v1535
          %v1537 = vmul.f32 %v1463, 1.442695
          %v1538 = vpow.pop %v1537
          %v1539 = vmul.f32 %v1464, 1.442695
          %v1540 = vpow.pop %v1539
          %v1541 = vmul.f32 %v1465, 1.442695
          %v1542 = vpow.pop %v1541
          %v1543 = vmul.f32 %v1466, 1.442695
          %v1544 = vpow.pop %v1543
          %v1545 = vmul.f32 %v1467, 1.442695
          %v1546 = vpow.pop %v1545
          %v1547 = vmul.f32 %v1468, 1.442695
          %v1548 = vpow.pop %v1547
          %v1549 = vmul.f32 %v1469, 1.442695
          %v1550 = vpow.pop %v1549
          %v1551 = vmul.f32 %v1470, 1.442695
          %v1552 = vpow.pop %v1551
          %v1553 = vmul.f32 %v1471, 1.442695
          %v1554 = vpow.pop %v1553
          %v1555 = vmul.f32 %v1472, 1.442695
          %v1556 = vpow.pop %v1555
          %v1557 = vmul.f32 %v1473, 1.442695
          %v1558 = vpow.pop %v1557
          %v1559 = vmul.f32 %v1474, 1.442695
          %v1560 = vpow.pop %v1559
          %v1561 = vmul.f32 %v1475, 1.442695
          %v1562 = vpow.pop %v1561
          %v1563 = vmul.f32 %v1476, 1.442695
          %v1564 = vpow.pop %v1563
          %v1565 = vmul.f32 %v1477, 1.442695
          %v1566 = vpow.pop %v1565
          %v1567 = vmul.f32 %v1478, 1.442695
          %v1568 = vpow.pop %v1567
          %v1569 = vmul.f32 %v1479, 1.442695
          %v1570 = vpow.pop %v1569
          %v1571 = vmul.f32 %v1480, 1.442695
          %v1572 = vpow.pop %v1571
          %v1573 = vmul.f32 %v1481, 1.442695
          %v1574 = vpow.pop %v1573
          %v1575 = vmul.f32 %v1482, 1.442695
          %v1576 = vpow.pop %v1575
          %v1577 = vmul.f32 %v1483, 1.442695
          %v1578 = vpow.pop %v1577
          %v1579 = vmul.f32 %v1484, 1.442695
          %v1580 = vpow.pop %v1579
          %v1581 = vmul.f32 %v1485, 1.442695
          %v1582 = vpow.pop %v1581
          %v1583 = vmul.f32 %v1486, 1.442695
          %v1584 = vpow.pop %v1583
          %v1585 = vmul.f32 %v1487, 1.442695
          %v1586 = vpow.pop %v1585
          %v1587 = vmul.f32 %v1488, 1.442695
          %v1588 = vpow.pop %v1587
          %v1589 = vmul.f32 %v1489, 1.442695
          %v1590 = vpow.pop %v1589
          %v1591 = vmul.f32 %v1490, 1.442695
          %v1592 = vpow.pop %v1591
          %v1593 = vmul.f32 %v1491, 1.442695
          %v1594 = vpow.pop %v1593
          %v1595 = vmul.f32 %v1492, 1.442695
          %v1596 = vpow.pop %v1595
          %v1597 = vadd.f32 %v1494, 1.0
          %v1598 = vadd.f32 %v1496, 1.0
          %v1599 = vadd.f32 %v1498, 1.0
          %v1600 = vadd.f32 %v1500, 1.0
          %v1601 = vadd.f32 %v1502, 1.0
          %v1602 = vadd.f32 %v1504, 1.0
          %v1603 = vadd.f32 %v1506, 1.0
          %v1604 = vadd.f32 %v1508, 1.0
          %v1605 = vadd.f32 %v1510, 1.0
          %v1606 = vadd.f32 %v1512, 1.0
          %v1607 = vadd.f32 %v1514, 1.0
          %v1608 = vadd.f32 %v1516, 1.0
          %v1609 = vadd.f32 %v1518, 1.0
          %v1610 = vadd.f32 %v1520, 1.0
          %v1611 = vadd.f32 %v1522, 1.0
          %v1612 = vadd.f32 %v1524, 1.0
          %v1613 = vadd.f32 %v1526, 1.0
          %v1614 = vadd.f32 %v1528, 1.0
          %v1615 = vadd.f32 %v1530, 1.0
          %v1616 = vadd.f32 %v1532, 1.0
          %v1617 = vadd.f32 %v1534, 1.0
          %v1618 = vadd.f32 %v1536, 1.0
          %v1619 = vadd.f32 %v1538, 1.0
          %v1620 = vadd.f32 %v1540, 1.0
          %v1621 = vadd.f32 %v1542, 1.0
          %v1622 = vadd.f32 %v1544, 1.0
          %v1623 = vadd.f32 %v1546, 1.0
          %v1624 = vadd.f32 %v1548, 1.0
          %v1625 = vadd.f32 %v1550, 1.0
          %v1626 = vadd.f32 %v1552, 1.0
          %v1627 = vadd.f32 %v1554, 1.0
          %v1628 = vadd.f32 %v1556, 1.0
          %v1629 = vadd.f32 %v1558, 1.0
          %v1630 = vadd.f32 %v1560, 1.0
          %v1631 = vadd.f32 %v1562, 1.0
          %v1632 = vadd.f32 %v1564, 1.0
          %v1633 = vadd.f32 %v1566, 1.0
          %v1634 = vadd.f32 %v1568, 1.0
          %v1635 = vadd.f32 %v1570, 1.0
          %v1636 = vadd.f32 %v1572, 1.0
          %v1637 = vadd.f32 %v1574, 1.0
          %v1638 = vadd.f32 %v1576, 1.0
          %v1639 = vadd.f32 %v1578, 1.0
          %v1640 = vadd.f32 %v1580, 1.0
          %v1641 = vadd.f32 %v1582, 1.0
          %v1642 = vadd.f32 %v1584, 1.0
          %v1643 = vadd.f32 %v1586, 1.0
          %v1644 = vadd.f32 %v1588, 1.0
          %v1645 = vadd.f32 %v1590, 1.0
          %v1646 = vadd.f32 %v1592, 1.0
          %v1647 = vadd.f32 %v1594, 1.0
          %v1648 = vadd.f32 %v1596, 1.0
          %v1649 = vrcp.pop %v1597
          %v1650 = vmul.f32 %v1597, %v1649
          %v1651 = vsub.f32 1.0, %v1650
          %v1652 = vmul.f32 %v1649, %v1651
          %v1653 = vadd.f32 %v1649, %v1652
          %vm1654 = vweird.f32 %v1597
          %vm1655 = vweird.f32 %v1649
          %vm1656 = vmor %vm1654, %vm1655
          %v1657 = vsel %vm1656, %v1649, %v1653
          %v1658 = vand.u32 2147483647, %v1597
          %vm1659 = vcmp.eq.f32.partialorder %v1658, 8.507059e+37
          %v1660 = vand.u32 %v1597, 2147483648
          %v1661 = vor.u32 1.1754944e-38, %v1660
          %v1662 = vsel %vm1659, %v1661, %v1657
          %v1663 = vmul.f32 1.0, %v1662
          %v1664 = vrcp.pop %v1598
          %v1665 = vmul.f32 %v1598, %v1664
          %v1666 = vsub.f32 1.0, %v1665
          %v1667 = vmul.f32 %v1664, %v1666
          %v1668 = vadd.f32 %v1664, %v1667
          %vm1669 = vweird.f32 %v1598
          %vm1670 = vweird.f32 %v1664
          %vm1671 = vmor %vm1669, %vm1670
          %v1672 = vsel %vm1671, %v1664, %v1668
          %v1673 = vand.u32 2147483647, %v1598
          %vm1674 = vcmp.eq.f32.partialorder %v1673, 8.507059e+37
          %v1675 = vand.u32 %v1598, 2147483648
          %v1676 = vor.u32 1.1754944e-38, %v1675
          %v1677 = vsel %vm1674, %v1676, %v1672
          %v1678 = vmul.f32 1.0, %v1677
          %v1679 = vrcp.pop %v1599
          %v1680 = vmul.f32 %v1599, %v1679
          %v1681 = vsub.f32 1.0, %v1680
          %v1682 = vmul.f32 %v1679, %v1681
          %v1683 = vadd.f32 %v1679, %v1682
          %vm1684 = vweird.f32 %v1599
          %vm1685 = vweird.f32 %v1679
          %vm1686 = vmor %vm1684, %vm1685
          %v1687 = vsel %vm1686, %v1679, %v1683
          %v1688 = vand.u32 2147483647, %v1599
          %vm1689 = vcmp.eq.f32.partialorder %v1688, 8.507059e+37
          %v1690 = vand.u32 %v1599, 2147483648
          %v1691 = vor.u32 1.1754944e-38, %v1690
          %v1692 = vsel %vm1689, %v1691, %v1687
          %v1693 = vmul.f32 1.0, %v1692
          %v1694 = vrcp.pop %v1600
          %v1695 = vmul.f32 %v1600, %v1694
          %v1696 = vsub.f32 1.0, %v1695
          %v1697 = vmul.f32 %v1694, %v1696
          %v1698 = vadd.f32 %v1694, %v1697
          %vm1699 = vweird.f32 %v1600
          %vm1700 = vweird.f32 %v1694
          %vm1701 = vmor %vm1699, %vm1700
          %v1702 = vsel %vm1701, %v1694, %v1698
          %v1703 = vand.u32 2147483647, %v1600
          %vm1704 = vcmp.eq.f32.partialorder %v1703, 8.507059e+37
          %v1705 = vand.u32 %v1600, 2147483648
          %v1706 = vor.u32 1.1754944e-38, %v1705
          %v1707 = vsel %vm1704, %v1706, %v1702
          %v1708 = vmul.f32 1.0, %v1707
          %v1709 = vrcp.pop %v1601
          %v1710 = vmul.f32 %v1601, %v1709
          %v1711 = vsub.f32 1.0, %v1710
          %v1712 = vmul.f32 %v1709, %v1711
          %v1713 = vadd.f32 %v1709, %v1712
          %vm1714 = vweird.f32 %v1601
          %vm1715 = vweird.f32 %v1709
          %vm1716 = vmor %vm1714, %vm1715
          %v1717 = vsel %vm1716, %v1709, %v1713
          %v1718 = vand.u32 2147483647, %v1601
          %vm1719 = vcmp.eq.f32.partialorder %v1718, 8.507059e+37
          %v1720 = vand.u32 %v1601, 2147483648
          %v1721 = vor.u32 1.1754944e-38, %v1720
          %v1722 = vsel %vm1719, %v1721, %v1717
          %v1723 = vmul.f32 1.0, %v1722
          %v1724 = vrcp.pop %v1602
          %v1725 = vmul.f32 %v1602, %v1724
          %v1726 = vsub.f32 1.0, %v1725
          %v1727 = vmul.f32 %v1724, %v1726
          %v1728 = vadd.f32 %v1724, %v1727
          %vm1729 = vweird.f32 %v1602
          %vm1730 = vweird.f32 %v1724
          %vm1731 = vmor %vm1729, %vm1730
          %v1732 = vsel %vm1731, %v1724, %v1728
          %v1733 = vand.u32 2147483647, %v1602
          %vm1734 = vcmp.eq.f32.partialorder %v1733, 8.507059e+37
          %v1735 = vand.u32 %v1602, 2147483648
          %v1736 = vor.u32 1.1754944e-38, %v1735
          %v1737 = vsel %vm1734, %v1736, %v1732
          %v1738 = vmul.f32 1.0, %v1737
          %v1739 = vrcp.pop %v1603
          %v1740 = vmul.f32 %v1603, %v1739
          %v1741 = vsub.f32 1.0, %v1740
          %v1742 = vmul.f32 %v1739, %v1741
          %v1743 = vadd.f32 %v1739, %v1742
          %vm1744 = vweird.f32 %v1603
          %vm1745 = vweird.f32 %v1739
          %vm1746 = vmor %vm1744, %vm1745
          %v1747 = vsel %vm1746, %v1739, %v1743
          %v1748 = vand.u32 2147483647, %v1603
          %vm1749 = vcmp.eq.f32.partialorder %v1748, 8.507059e+37
          %v1750 = vand.u32 %v1603, 2147483648
          %v1751 = vor.u32 1.1754944e-38, %v1750
          %v1752 = vsel %vm1749, %v1751, %v1747
          %v1753 = vmul.f32 1.0, %v1752
          %v1754 = vrcp.pop %v1604
          %v1755 = vmul.f32 %v1604, %v1754
          %v1756 = vsub.f32 1.0, %v1755
          %v1757 = vmul.f32 %v1754, %v1756
          %v1758 = vadd.f32 %v1754, %v1757
          %vm1759 = vweird.f32 %v1604
          %vm1760 = vweird.f32 %v1754
          %vm1761 = vmor %vm1759, %vm1760
          %v1762 = vsel %vm1761, %v1754, %v1758
          %v1763 = vand.u32 2147483647, %v1604
          %vm1764 = vcmp.eq.f32.partialorder %v1763, 8.507059e+37
          %v1765 = vand.u32 %v1604, 2147483648
          %v1766 = vor.u32 1.1754944e-38, %v1765
          %v1767 = vsel %vm1764, %v1766, %v1762
          %v1768 = vmul.f32 1.0, %v1767
          %v1769 = vrcp.pop %v1605
          %v1770 = vmul.f32 %v1605, %v1769
          %v1771 = vsub.f32 1.0, %v1770
          %v1772 = vmul.f32 %v1769, %v1771
          %v1773 = vadd.f32 %v1769, %v1772
          %vm1774 = vweird.f32 %v1605
          %vm1775 = vweird.f32 %v1769
          %vm1776 = vmor %vm1774, %vm1775
          %v1777 = vsel %vm1776, %v1769, %v1773
          %v1778 = vand.u32 2147483647, %v1605
          %vm1779 = vcmp.eq.f32.partialorder %v1778, 8.507059e+37
          %v1780 = vand.u32 %v1605, 2147483648
          %v1781 = vor.u32 1.1754944e-38, %v1780
          %v1782 = vsel %vm1779, %v1781, %v1777
          %v1783 = vmul.f32 1.0, %v1782
          %v1784 = vrcp.pop %v1606
          %v1785 = vmul.f32 %v1606, %v1784
          %v1786 = vsub.f32 1.0, %v1785
          %v1787 = vmul.f32 %v1784, %v1786
          %v1788 = vadd.f32 %v1784, %v1787
          %vm1789 = vweird.f32 %v1606
          %vm1790 = vweird.f32 %v1784
          %vm1791 = vmor %vm1789, %vm1790
          %v1792 = vsel %vm1791, %v1784, %v1788
          %v1793 = vand.u32 2147483647, %v1606
          %vm1794 = vcmp.eq.f32.partialorder %v1793, 8.507059e+37
          %v1795 = vand.u32 %v1606, 2147483648
          %v1796 = vor.u32 1.1754944e-38, %v1795
          %v1797 = vsel %vm1794, %v1796, %v1792
          %v1798 = vmul.f32 1.0, %v1797
          %v1799 = vrcp.pop %v1607
          %v1800 = vmul.f32 %v1607, %v1799
          %v1801 = vsub.f32 1.0, %v1800
          %v1802 = vmul.f32 %v1799, %v1801
          %v1803 = vadd.f32 %v1799, %v1802
          %vm1804 = vweird.f32 %v1607
          %vm1805 = vweird.f32 %v1799
          %vm1806 = vmor %vm1804, %vm1805
          %v1807 = vsel %vm1806, %v1799, %v1803
          %v1808 = vand.u32 2147483647, %v1607
          %vm1809 = vcmp.eq.f32.partialorder %v1808, 8.507059e+37
          %v1810 = vand.u32 %v1607, 2147483648
          %v1811 = vor.u32 1.1754944e-38, %v1810
          %v1812 = vsel %vm1809, %v1811, %v1807
          %v1813 = vmul.f32 1.0, %v1812
          %v1814 = vrcp.pop %v1608
          %v1815 = vmul.f32 %v1608, %v1814
          %v1816 = vsub.f32 1.0, %v1815
          %v1817 = vmul.f32 %v1814, %v1816
          %v1818 = vadd.f32 %v1814, %v1817
          %vm1819 = vweird.f32 %v1608
          %vm1820 = vweird.f32 %v1814
          %vm1821 = vmor %vm1819, %vm1820
          %v1822 = vsel %vm1821, %v1814, %v1818
          %v1823 = vand.u32 2147483647, %v1608
          %vm1824 = vcmp.eq.f32.partialorder %v1823, 8.507059e+37
          %v1825 = vand.u32 %v1608, 2147483648
          %v1826 = vor.u32 1.1754944e-38, %v1825
          %v1827 = vsel %vm1824, %v1826, %v1822
          %v1828 = vmul.f32 1.0, %v1827
          %v1829 = vrcp.pop %v1609
          %v1830 = vmul.f32 %v1609, %v1829
          %v1831 = vsub.f32 1.0, %v1830
          %v1832 = vmul.f32 %v1829, %v1831
          %v1833 = vadd.f32 %v1829, %v1832
          %vm1834 = vweird.f32 %v1609
          %vm1835 = vweird.f32 %v1829
          %vm1836 = vmor %vm1834, %vm1835
          %v1837 = vsel %vm1836, %v1829, %v1833
          %v1838 = vand.u32 2147483647, %v1609
          %vm1839 = vcmp.eq.f32.partialorder %v1838, 8.507059e+37
          %v1840 = vand.u32 %v1609, 2147483648
          %v1841 = vor.u32 1.1754944e-38, %v1840
          %v1842 = vsel %vm1839, %v1841, %v1837
          %v1843 = vmul.f32 1.0, %v1842
          %v1844 = vrcp.pop %v1610
          %v1845 = vmul.f32 %v1610, %v1844
          %v1846 = vsub.f32 1.0, %v1845
          %v1847 = vmul.f32 %v1844, %v1846
          %v1848 = vadd.f32 %v1844, %v1847
          %vm1849 = vweird.f32 %v1610
          %vm1850 = vweird.f32 %v1844
          %vm1851 = vmor %vm1849, %vm1850
          %v1852 = vsel %vm1851, %v1844, %v1848
          %v1853 = vand.u32 2147483647, %v1610
          %vm1854 = vcmp.eq.f32.partialorder %v1853, 8.507059e+37
          %v1855 = vand.u32 %v1610, 2147483648
          %v1856 = vor.u32 1.1754944e-38, %v1855
          %v1857 = vsel %vm1854, %v1856, %v1852
          %v1858 = vmul.f32 1.0, %v1857
          %v1859 = vrcp.pop %v1611
          %v1860 = vmul.f32 %v1611, %v1859
          %v1861 = vsub.f32 1.0, %v1860
          %v1862 = vmul.f32 %v1859, %v1861
          %v1863 = vadd.f32 %v1859, %v1862
          %vm1864 = vweird.f32 %v1611
          %vm1865 = vweird.f32 %v1859
          %vm1866 = vmor %vm1864, %vm1865
          %v1867 = vsel %vm1866, %v1859, %v1863
          %v1868 = vand.u32 2147483647, %v1611
          %vm1869 = vcmp.eq.f32.partialorder %v1868, 8.507059e+37
          %v1870 = vand.u32 %v1611, 2147483648
          %v1871 = vor.u32 1.1754944e-38, %v1870
          %v1872 = vsel %vm1869, %v1871, %v1867
          %v1873 = vmul.f32 1.0, %v1872
          %v1874 = vrcp.pop %v1612
          %v1875 = vmul.f32 %v1612, %v1874
          %v1876 = vsub.f32 1.0, %v1875
          %v1877 = vmul.f32 %v1874, %v1876
          %v1878 = vadd.f32 %v1874, %v1877
          %vm1879 = vweird.f32 %v1612
          %vm1880 = vweird.f32 %v1874
          %vm1881 = vmor %vm1879, %vm1880
          %v1882 = vsel %vm1881, %v1874, %v1878
          %v1883 = vand.u32 2147483647, %v1612
          %vm1884 = vcmp.eq.f32.partialorder %v1883, 8.507059e+37
          %v1885 = vand.u32 %v1612, 2147483648
          %v1886 = vor.u32 1.1754944e-38, %v1885
          %v1887 = vsel %vm1884, %v1886, %v1882
          %v1888 = vmul.f32 1.0, %v1887
          %v1889 = vrcp.pop %v1613
          %v1890 = vmul.f32 %v1613, %v1889
          %v1891 = vsub.f32 1.0, %v1890
          %v1892 = vmul.f32 %v1889, %v1891
          %v1893 = vadd.f32 %v1889, %v1892
          %vm1894 = vweird.f32 %v1613
          %vm1895 = vweird.f32 %v1889
          %vm1896 = vmor %vm1894, %vm1895
          %v1897 = vsel %vm1896, %v1889, %v1893
          %v1898 = vand.u32 2147483647, %v1613
          %vm1899 = vcmp.eq.f32.partialorder %v1898, 8.507059e+37
          %v1900 = vand.u32 %v1613, 2147483648
          %v1901 = vor.u32 1.1754944e-38, %v1900
          %v1902 = vsel %vm1899, %v1901, %v1897
          %v1903 = vmul.f32 1.0, %v1902
          %v1904 = vrcp.pop %v1614
          %v1905 = vmul.f32 %v1614, %v1904
          %v1906 = vsub.f32 1.0, %v1905
          %v1907 = vmul.f32 %v1904, %v1906
          %v1908 = vadd.f32 %v1904, %v1907
          %vm1909 = vweird.f32 %v1614
          %vm1910 = vweird.f32 %v1904
          %vm1911 = vmor %vm1909, %vm1910
          %v1912 = vsel %vm1911, %v1904, %v1908
          %v1913 = vand.u32 2147483647, %v1614
          %vm1914 = vcmp.eq.f32.partialorder %v1913, 8.507059e+37
          %v1915 = vand.u32 %v1614, 2147483648
          %v1916 = vor.u32 1.1754944e-38, %v1915
          %v1917 = vsel %vm1914, %v1916, %v1912
          %v1918 = vmul.f32 1.0, %v1917
          %v1919 = vrcp.pop %v1615
          %v1920 = vmul.f32 %v1615, %v1919
          %v1921 = vsub.f32 1.0, %v1920
          %v1922 = vmul.f32 %v1919, %v1921
          %v1923 = vadd.f32 %v1919, %v1922
          %vm1924 = vweird.f32 %v1615
          %vm1925 = vweird.f32 %v1919
          %vm1926 = vmor %vm1924, %vm1925
          %v1927 = vsel %vm1926, %v1919, %v1923
          %v1928 = vand.u32 2147483647, %v1615
          %vm1929 = vcmp.eq.f32.partialorder %v1928, 8.507059e+37
          %v1930 = vand.u32 %v1615, 2147483648
          %v1931 = vor.u32 1.1754944e-38, %v1930
          %v1932 = vsel %vm1929, %v1931, %v1927
          %v1933 = vmul.f32 1.0, %v1932
          %v1934 = vrcp.pop %v1616
          %v1935 = vmul.f32 %v1616, %v1934
          %v1936 = vsub.f32 1.0, %v1935
          %v1937 = vmul.f32 %v1934, %v1936
          %v1938 = vadd.f32 %v1934, %v1937
          %vm1939 = vweird.f32 %v1616
          %vm1940 = vweird.f32 %v1934
          %vm1941 = vmor %vm1939, %vm1940
          %v1942 = vsel %vm1941, %v1934, %v1938
          %v1943 = vand.u32 2147483647, %v1616
          %vm1944 = vcmp.eq.f32.partialorder %v1943, 8.507059e+37
          %v1945 = vand.u32 %v1616, 2147483648
          %v1946 = vor.u32 1.1754944e-38, %v1945
          %v1947 = vsel %vm1944, %v1946, %v1942
          %v1948 = vmul.f32 1.0, %v1947
          %v1949 = vrcp.pop %v1617
          %v1950 = vmul.f32 %v1617, %v1949
          %v1951 = vsub.f32 1.0, %v1950
          %v1952 = vmul.f32 %v1949, %v1951
          %v1953 = vadd.f32 %v1949, %v1952
          %vm1954 = vweird.f32 %v1617
          %vm1955 = vweird.f32 %v1949
          %vm1956 = vmor %vm1954, %vm1955
          %v1957 = vsel %vm1956, %v1949, %v1953
          %v1958 = vand.u32 2147483647, %v1617
          %vm1959 = vcmp.eq.f32.partialorder %v1958, 8.507059e+37
          %v1960 = vand.u32 %v1617, 2147483648
          %v1961 = vor.u32 1.1754944e-38, %v1960
          %v1962 = vsel %vm1959, %v1961, %v1957
          %v1963 = vmul.f32 1.0, %v1962
          %v1964 = vrcp.pop %v1618
          %v1965 = vmul.f32 %v1618, %v1964
          %v1966 = vsub.f32 1.0, %v1965
          %v1967 = vmul.f32 %v1964, %v1966
          %v1968 = vadd.f32 %v1964, %v1967
          %vm1969 = vweird.f32 %v1618
          %vm1970 = vweird.f32 %v1964
          %vm1971 = vmor %vm1969, %vm1970
          %v1972 = vsel %vm1971, %v1964, %v1968
          %v1973 = vand.u32 2147483647, %v1618
          %vm1974 = vcmp.eq.f32.partialorder %v1973, 8.507059e+37
          %v1975 = vand.u32 %v1618, 2147483648
          %v1976 = vor.u32 1.1754944e-38, %v1975
          %v1977 = vsel %vm1974, %v1976, %v1972
          %v1978 = vmul.f32 1.0, %v1977
          %v1979 = vrcp.pop %v1619
          %v1980 = vmul.f32 %v1619, %v1979
          %v1981 = vsub.f32 1.0, %v1980
          %v1982 = vmul.f32 %v1979, %v1981
          %v1983 = vadd.f32 %v1979, %v1982
          %vm1984 = vweird.f32 %v1619
          %vm1985 = vweird.f32 %v1979
          %vm1986 = vmor %vm1984, %vm1985
          %v1987 = vsel %vm1986, %v1979, %v1983
          %v1988 = vand.u32 2147483647, %v1619
          %vm1989 = vcmp.eq.f32.partialorder %v1988, 8.507059e+37
          %v1990 = vand.u32 %v1619, 2147483648
          %v1991 = vor.u32 1.1754944e-38, %v1990
          %v1992 = vsel %vm1989, %v1991, %v1987
          %v1993 = vmul.f32 1.0, %v1992
          %v1994 = vrcp.pop %v1620
          %v1995 = vmul.f32 %v1620, %v1994
          %v1996 = vsub.f32 1.0, %v1995
          %v1997 = vmul.f32 %v1994, %v1996
          %v1998 = vadd.f32 %v1994, %v1997
          %vm1999 = vweird.f32 %v1620
          %vm2000 = vweird.f32 %v1994
          %vm2001 = vmor %vm1999, %vm2000
          %v2002 = vsel %vm2001, %v1994, %v1998
          %v2003 = vand.u32 2147483647, %v1620
          %vm2004 = vcmp.eq.f32.partialorder %v2003, 8.507059e+37
          %v2005 = vand.u32 %v1620, 2147483648
          %v2006 = vor.u32 1.1754944e-38, %v2005
          %v2007 = vsel %vm2004, %v2006, %v2002
          %v2008 = vmul.f32 1.0, %v2007
          %v2009 = vrcp.pop %v1621
          %v2010 = vmul.f32 %v1621, %v2009
          %v2011 = vsub.f32 1.0, %v2010
          %v2012 = vmul.f32 %v2009, %v2011
          %v2013 = vadd.f32 %v2009, %v2012
          %vm2014 = vweird.f32 %v1621
          %vm2015 = vweird.f32 %v2009
          %vm2016 = vmor %vm2014, %vm2015
          %v2017 = vsel %vm2016, %v2009, %v2013
          %v2018 = vand.u32 2147483647, %v1621
          %vm2019 = vcmp.eq.f32.partialorder %v2018, 8.507059e+37
          %v2020 = vand.u32 %v1621, 2147483648
          %v2021 = vor.u32 1.1754944e-38, %v2020
          %v2022 = vsel %vm2019, %v2021, %v2017
          %v2023 = vmul.f32 1.0, %v2022
          %v2024 = vrcp.pop %v1622
          %v2025 = vmul.f32 %v1622, %v2024
          %v2026 = vsub.f32 1.0, %v2025
          %v2027 = vmul.f32 %v2024, %v2026
          %v2028 = vadd.f32 %v2024, %v2027
          %vm2029 = vweird.f32 %v1622
          %vm2030 = vweird.f32 %v2024
          %vm2031 = vmor %vm2029, %vm2030
          %v2032 = vsel %vm2031, %v2024, %v2028
          %v2033 = vand.u32 2147483647, %v1622
          %vm2034 = vcmp.eq.f32.partialorder %v2033, 8.507059e+37
          %v2035 = vand.u32 %v1622, 2147483648
          %v2036 = vor.u32 1.1754944e-38, %v2035
          %v2037 = vsel %vm2034, %v2036, %v2032
          %v2038 = vmul.f32 1.0, %v2037
          %v2039 = vrcp.pop %v1623
          %v2040 = vmul.f32 %v1623, %v2039
          %v2041 = vsub.f32 1.0, %v2040
          %v2042 = vmul.f32 %v2039, %v2041
          %v2043 = vadd.f32 %v2039, %v2042
          %vm2044 = vweird.f32 %v1623
          %vm2045 = vweird.f32 %v2039
          %vm2046 = vmor %vm2044, %vm2045
          %v2047 = vsel %vm2046, %v2039, %v2043
          %v2048 = vand.u32 2147483647, %v1623
          %vm2049 = vcmp.eq.f32.partialorder %v2048, 8.507059e+37
          %v2050 = vand.u32 %v1623, 2147483648
          %v2051 = vor.u32 1.1754944e-38, %v2050
          %v2052 = vsel %vm2049, %v2051, %v2047
          %v2053 = vmul.f32 1.0, %v2052
          %v2054 = vrcp.pop %v1624
          %v2055 = vmul.f32 %v1624, %v2054
          %v2056 = vsub.f32 1.0, %v2055
          %v2057 = vmul.f32 %v2054, %v2056
          %v2058 = vadd.f32 %v2054, %v2057
          %vm2059 = vweird.f32 %v1624
          %vm2060 = vweird.f32 %v2054
          %vm2061 = vmor %vm2059, %vm2060
          %v2062 = vsel %vm2061, %v2054, %v2058
          %v2063 = vand.u32 2147483647, %v1624
          %vm2064 = vcmp.eq.f32.partialorder %v2063, 8.507059e+37
          %v2065 = vand.u32 %v1624, 2147483648
          %v2066 = vor.u32 1.1754944e-38, %v2065
          %v2067 = vsel %vm2064, %v2066, %v2062
          %v2068 = vmul.f32 1.0, %v2067
          %v2069 = vrcp.pop %v1625
          %v2070 = vmul.f32 %v1625, %v2069
          %v2071 = vsub.f32 1.0, %v2070
          %v2072 = vmul.f32 %v2069, %v2071
          %v2073 = vadd.f32 %v2069, %v2072
          %vm2074 = vweird.f32 %v1625
          %vm2075 = vweird.f32 %v2069
          %vm2076 = vmor %vm2074, %vm2075
          %v2077 = vsel %vm2076, %v2069, %v2073
          %v2078 = vand.u32 2147483647, %v1625
          %vm2079 = vcmp.eq.f32.partialorder %v2078, 8.507059e+37
          %v2080 = vand.u32 %v1625, 2147483648
          %v2081 = vor.u32 1.1754944e-38, %v2080
          %v2082 = vsel %vm2079, %v2081, %v2077
          %v2083 = vmul.f32 1.0, %v2082
          %v2084 = vrcp.pop %v1626
          %v2085 = vmul.f32 %v1626, %v2084
          %v2086 = vsub.f32 1.0, %v2085
          %v2087 = vmul.f32 %v2084, %v2086
          %v2088 = vadd.f32 %v2084, %v2087
          %vm2089 = vweird.f32 %v1626
          %vm2090 = vweird.f32 %v2084
          %vm2091 = vmor %vm2089, %vm2090
          %v2092 = vsel %vm2091, %v2084, %v2088
          %v2093 = vand.u32 2147483647, %v1626
          %vm2094 = vcmp.eq.f32.partialorder %v2093, 8.507059e+37
          %v2095 = vand.u32 %v1626, 2147483648
          %v2096 = vor.u32 1.1754944e-38, %v2095
          %v2097 = vsel %vm2094, %v2096, %v2092
          %v2098 = vmul.f32 1.0, %v2097
          %v2099 = vrcp.pop %v1627
          %v2100 = vmul.f32 %v1627, %v2099
          %v2101 = vsub.f32 1.0, %v2100
          %v2102 = vmul.f32 %v2099, %v2101
          %v2103 = vadd.f32 %v2099, %v2102
          %vm2104 = vweird.f32 %v1627
          %vm2105 = vweird.f32 %v2099
          %vm2106 = vmor %vm2104, %vm2105
          %v2107 = vsel %vm2106, %v2099, %v2103
          %v2108 = vand.u32 2147483647, %v1627
          %vm2109 = vcmp.eq.f32.partialorder %v2108, 8.507059e+37
          %v2110 = vand.u32 %v1627, 2147483648
          %v2111 = vor.u32 1.1754944e-38, %v2110
          %v2112 = vsel %vm2109, %v2111, %v2107
          %v2113 = vmul.f32 1.0, %v2112
          %v2114 = vrcp.pop %v1628
          %v2115 = vmul.f32 %v1628, %v2114
          %v2116 = vsub.f32 1.0, %v2115
          %v2117 = vmul.f32 %v2114, %v2116
          %v2118 = vadd.f32 %v2114, %v2117
          %vm2119 = vweird.f32 %v1628
          %vm2120 = vweird.f32 %v2114
          %vm2121 = vmor %vm2119, %vm2120
          %v2122 = vsel %vm2121, %v2114, %v2118
          %v2123 = vand.u32 2147483647, %v1628
          %vm2124 = vcmp.eq.f32.partialorder %v2123, 8.507059e+37
          %v2125 = vand.u32 %v1628, 2147483648
          %v2126 = vor.u32 1.1754944e-38, %v2125
          %v2127 = vsel %vm2124, %v2126, %v2122
          %v2128 = vmul.f32 1.0, %v2127
          %v2129 = vrcp.pop %v1629
          %v2130 = vmul.f32 %v1629, %v2129
          %v2131 = vsub.f32 1.0, %v2130
          %v2132 = vmul.f32 %v2129, %v2131
          %v2133 = vadd.f32 %v2129, %v2132
          %vm2134 = vweird.f32 %v1629
          %vm2135 = vweird.f32 %v2129
          %vm2136 = vmor %vm2134, %vm2135
          %v2137 = vsel %vm2136, %v2129, %v2133
          %v2138 = vand.u32 2147483647, %v1629
          %vm2139 = vcmp.eq.f32.partialorder %v2138, 8.507059e+37
          %v2140 = vand.u32 %v1629, 2147483648
          %v2141 = vor.u32 1.1754944e-38, %v2140
          %v2142 = vsel %vm2139, %v2141, %v2137
          %v2143 = vmul.f32 1.0, %v2142
          %v2144 = vrcp.pop %v1630
          %v2145 = vmul.f32 %v1630, %v2144
          %v2146 = vsub.f32 1.0, %v2145
          %v2147 = vmul.f32 %v2144, %v2146
          %v2148 = vadd.f32 %v2144, %v2147
          %vm2149 = vweird.f32 %v1630
          %vm2150 = vweird.f32 %v2144
          %vm2151 = vmor %vm2149, %vm2150
          %v2152 = vsel %vm2151, %v2144, %v2148
          %v2153 = vand.u32 2147483647, %v1630
          %vm2154 = vcmp.eq.f32.partialorder %v2153, 8.507059e+37
          %v2155 = vand.u32 %v1630, 2147483648
          %v2156 = vor.u32 1.1754944e-38, %v2155
          %v2157 = vsel %vm2154, %v2156, %v2152
          %v2158 = vmul.f32 1.0, %v2157
          %v2159 = vrcp.pop %v1631
          %v2160 = vmul.f32 %v1631, %v2159
          %v2161 = vsub.f32 1.0, %v2160
          %v2162 = vmul.f32 %v2159, %v2161
          %v2163 = vadd.f32 %v2159, %v2162
          %vm2164 = vweird.f32 %v1631
          %vm2165 = vweird.f32 %v2159
          %vm2166 = vmor %vm2164, %vm2165
          %v2167 = vsel %vm2166, %v2159, %v2163
          %v2168 = vand.u32 2147483647, %v1631
          %vm2169 = vcmp.eq.f32.partialorder %v2168, 8.507059e+37
          %v2170 = vand.u32 %v1631, 2147483648
          %v2171 = vor.u32 1.1754944e-38, %v2170
          %v2172 = vsel %vm2169, %v2171, %v2167
          %v2173 = vmul.f32 1.0, %v2172
          %v2174 = vrcp.pop %v1632
          %v2175 = vmul.f32 %v1632, %v2174
          %v2176 = vsub.f32 1.0, %v2175
          %v2177 = vmul.f32 %v2174, %v2176
          %v2178 = vadd.f32 %v2174, %v2177
          %vm2179 = vweird.f32 %v1632
          %vm2180 = vweird.f32 %v2174
          %vm2181 = vmor %vm2179, %vm2180
          %v2182 = vsel %vm2181, %v2174, %v2178
          %v2183 = vand.u32 2147483647, %v1632
          %vm2184 = vcmp.eq.f32.partialorder %v2183, 8.507059e+37
          %v2185 = vand.u32 %v1632, 2147483648
          %v2186 = vor.u32 1.1754944e-38, %v2185
          %v2187 = vsel %vm2184, %v2186, %v2182
          %v2188 = vmul.f32 1.0, %v2187
          %v2189 = vrcp.pop %v1633
          %v2190 = vmul.f32 %v1633, %v2189
          %v2191 = vsub.f32 1.0, %v2190
          %v2192 = vmul.f32 %v2189, %v2191
          %v2193 = vadd.f32 %v2189, %v2192
          %vm2194 = vweird.f32 %v1633
          %vm2195 = vweird.f32 %v2189
          %vm2196 = vmor %vm2194, %vm2195
          %v2197 = vsel %vm2196, %v2189, %v2193
          %v2198 = vand.u32 2147483647, %v1633
          %vm2199 = vcmp.eq.f32.partialorder %v2198, 8.507059e+37
          %v2200 = vand.u32 %v1633, 2147483648
          %v2201 = vor.u32 1.1754944e-38, %v2200
          %v2202 = vsel %vm2199, %v2201, %v2197
          %v2203 = vmul.f32 1.0, %v2202
          %v2204 = vrcp.pop %v1634
          %v2205 = vmul.f32 %v1634, %v2204
          %v2206 = vsub.f32 1.0, %v2205
          %v2207 = vmul.f32 %v2204, %v2206
          %v2208 = vadd.f32 %v2204, %v2207
          %vm2209 = vweird.f32 %v1634
          %vm2210 = vweird.f32 %v2204
          %vm2211 = vmor %vm2209, %vm2210
          %v2212 = vsel %vm2211, %v2204, %v2208
          %v2213 = vand.u32 2147483647, %v1634
          %vm2214 = vcmp.eq.f32.partialorder %v2213, 8.507059e+37
          %v2215 = vand.u32 %v1634, 2147483648
          %v2216 = vor.u32 1.1754944e-38, %v2215
          %v2217 = vsel %vm2214, %v2216, %v2212
          %v2218 = vmul.f32 1.0, %v2217
          %v2219 = vrcp.pop %v1635
          %v2220 = vmul.f32 %v1635, %v2219
          %v2221 = vsub.f32 1.0, %v2220
          %v2222 = vmul.f32 %v2219, %v2221
          %v2223 = vadd.f32 %v2219, %v2222
          %vm2224 = vweird.f32 %v1635
          %vm2225 = vweird.f32 %v2219
          %vm2226 = vmor %vm2224, %vm2225
          %v2227 = vsel %vm2226, %v2219, %v2223
          %v2228 = vand.u32 2147483647, %v1635
          %vm2229 = vcmp.eq.f32.partialorder %v2228, 8.507059e+37
          %v2230 = vand.u32 %v1635, 2147483648
          %v2231 = vor.u32 1.1754944e-38, %v2230
          %v2232 = vsel %vm2229, %v2231, %v2227
          %v2233 = vmul.f32 1.0, %v2232
          %v2234 = vrcp.pop %v1636
          %v2235 = vmul.f32 %v1636, %v2234
          %v2236 = vsub.f32 1.0, %v2235
          %v2237 = vmul.f32 %v2234, %v2236
          %v2238 = vadd.f32 %v2234, %v2237
          %vm2239 = vweird.f32 %v1636
          %vm2240 = vweird.f32 %v2234
          %vm2241 = vmor %vm2239, %vm2240
          %v2242 = vsel %vm2241, %v2234, %v2238
          %v2243 = vand.u32 2147483647, %v1636
          %vm2244 = vcmp.eq.f32.partialorder %v2243, 8.507059e+37
          %v2245 = vand.u32 %v1636, 2147483648
          %v2246 = vor.u32 1.1754944e-38, %v2245
          %v2247 = vsel %vm2244, %v2246, %v2242
          %v2248 = vmul.f32 1.0, %v2247
          %v2249 = vrcp.pop %v1637
          %v2250 = vmul.f32 %v1637, %v2249
          %v2251 = vsub.f32 1.0, %v2250
          %v2252 = vmul.f32 %v2249, %v2251
          %v2253 = vadd.f32 %v2249, %v2252
          %vm2254 = vweird.f32 %v1637
          %vm2255 = vweird.f32 %v2249
          %vm2256 = vmor %vm2254, %vm2255
          %v2257 = vsel %vm2256, %v2249, %v2253
          %v2258 = vand.u32 2147483647, %v1637
          %vm2259 = vcmp.eq.f32.partialorder %v2258, 8.507059e+37
          %v2260 = vand.u32 %v1637, 2147483648
          %v2261 = vor.u32 1.1754944e-38, %v2260
          %v2262 = vsel %vm2259, %v2261, %v2257
          %v2263 = vmul.f32 1.0, %v2262
          %v2264 = vrcp.pop %v1638
          %v2265 = vmul.f32 %v1638, %v2264
          %v2266 = vsub.f32 1.0, %v2265
          %v2267 = vmul.f32 %v2264, %v2266
          %v2268 = vadd.f32 %v2264, %v2267
          %vm2269 = vweird.f32 %v1638
          %vm2270 = vweird.f32 %v2264
          %vm2271 = vmor %vm2269, %vm2270
          %v2272 = vsel %vm2271, %v2264, %v2268
          %v2273 = vand.u32 2147483647, %v1638
          %vm2274 = vcmp.eq.f32.partialorder %v2273, 8.507059e+37
          %v2275 = vand.u32 %v1638, 2147483648
          %v2276 = vor.u32 1.1754944e-38, %v2275
          %v2277 = vsel %vm2274, %v2276, %v2272
          %v2278 = vmul.f32 1.0, %v2277
          %v2279 = vrcp.pop %v1639
          %v2280 = vmul.f32 %v1639, %v2279
          %v2281 = vsub.f32 1.0, %v2280
          %v2282 = vmul.f32 %v2279, %v2281
          %v2283 = vadd.f32 %v2279, %v2282
          %vm2284 = vweird.f32 %v1639
          %vm2285 = vweird.f32 %v2279
          %vm2286 = vmor %vm2284, %vm2285
          %v2287 = vsel %vm2286, %v2279, %v2283
          %v2288 = vand.u32 2147483647, %v1639
          %vm2289 = vcmp.eq.f32.partialorder %v2288, 8.507059e+37
          %v2290 = vand.u32 %v1639, 2147483648
          %v2291 = vor.u32 1.1754944e-38, %v2290
          %v2292 = vsel %vm2289, %v2291, %v2287
          %v2293 = vmul.f32 1.0, %v2292
          %v2294 = vrcp.pop %v1640
          %v2295 = vmul.f32 %v1640, %v2294
          %v2296 = vsub.f32 1.0, %v2295
          %v2297 = vmul.f32 %v2294, %v2296
          %v2298 = vadd.f32 %v2294, %v2297
          %vm2299 = vweird.f32 %v1640
          %vm2300 = vweird.f32 %v2294
          %vm2301 = vmor %vm2299, %vm2300
          %v2302 = vsel %vm2301, %v2294, %v2298
          %v2303 = vand.u32 2147483647, %v1640
          %vm2304 = vcmp.eq.f32.partialorder %v2303, 8.507059e+37
          %v2305 = vand.u32 %v1640, 2147483648
          %v2306 = vor.u32 1.1754944e-38, %v2305
          %v2307 = vsel %vm2304, %v2306, %v2302
          %v2308 = vmul.f32 1.0, %v2307
          %v2309 = vrcp.pop %v1641
          %v2310 = vmul.f32 %v1641, %v2309
          %v2311 = vsub.f32 1.0, %v2310
          %v2312 = vmul.f32 %v2309, %v2311
          %v2313 = vadd.f32 %v2309, %v2312
          %vm2314 = vweird.f32 %v1641
          %vm2315 = vweird.f32 %v2309
          %vm2316 = vmor %vm2314, %vm2315
          %v2317 = vsel %vm2316, %v2309, %v2313
          %v2318 = vand.u32 2147483647, %v1641
          %vm2319 = vcmp.eq.f32.partialorder %v2318, 8.507059e+37
          %v2320 = vand.u32 %v1641, 2147483648
          %v2321 = vor.u32 1.1754944e-38, %v2320
          %v2322 = vsel %vm2319, %v2321, %v2317
          %v2323 = vmul.f32 1.0, %v2322
          %v2324 = vrcp.pop %v1642
          %v2325 = vmul.f32 %v1642, %v2324
          %v2326 = vsub.f32 1.0, %v2325
          %v2327 = vmul.f32 %v2324, %v2326
          %v2328 = vadd.f32 %v2324, %v2327
          %vm2329 = vweird.f32 %v1642
          %vm2330 = vweird.f32 %v2324
          %vm2331 = vmor %vm2329, %vm2330
          %v2332 = vsel %vm2331, %v2324, %v2328
          %v2333 = vand.u32 2147483647, %v1642
          %vm2334 = vcmp.eq.f32.partialorder %v2333, 8.507059e+37
          %v2335 = vand.u32 %v1642, 2147483648
          %v2336 = vor.u32 1.1754944e-38, %v2335
          %v2337 = vsel %vm2334, %v2336, %v2332
          %v2338 = vmul.f32 1.0, %v2337
          %v2339 = vrcp.pop %v1643
          %v2340 = vmul.f32 %v1643, %v2339
          %v2341 = vsub.f32 1.0, %v2340
          %v2342 = vmul.f32 %v2339, %v2341
          %v2343 = vadd.f32 %v2339, %v2342
          %vm2344 = vweird.f32 %v1643
          %vm2345 = vweird.f32 %v2339
          %vm2346 = vmor %vm2344, %vm2345
          %v2347 = vsel %vm2346, %v2339, %v2343
          %v2348 = vand.u32 2147483647, %v1643
          %vm2349 = vcmp.eq.f32.partialorder %v2348, 8.507059e+37
          %v2350 = vand.u32 %v1643, 2147483648
          %v2351 = vor.u32 1.1754944e-38, %v2350
          %v2352 = vsel %vm2349, %v2351, %v2347
          %v2353 = vmul.f32 1.0, %v2352
          %v2354 = vrcp.pop %v1644
          %v2355 = vmul.f32 %v1644, %v2354
          %v2356 = vsub.f32 1.0, %v2355
          %v2357 = vmul.f32 %v2354, %v2356
          %v2358 = vadd.f32 %v2354, %v2357
          %vm2359 = vweird.f32 %v1644
          %vm2360 = vweird.f32 %v2354
          %vm2361 = vmor %vm2359, %vm2360
          %v2362 = vsel %vm2361, %v2354, %v2358
          %v2363 = vand.u32 2147483647, %v1644
          %vm2364 = vcmp.eq.f32.partialorder %v2363, 8.507059e+37
          %v2365 = vand.u32 %v1644, 2147483648
          %v2366 = vor.u32 1.1754944e-38, %v2365
          %v2367 = vsel %vm2364, %v2366, %v2362
          %v2368 = vmul.f32 1.0, %v2367
          %v2369 = vrcp.pop %v1645
          %v2370 = vmul.f32 %v1645, %v2369
          %v2371 = vsub.f32 1.0, %v2370
          %v2372 = vmul.f32 %v2369, %v2371
          %v2373 = vadd.f32 %v2369, %v2372
          %vm2374 = vweird.f32 %v1645
          %vm2375 = vweird.f32 %v2369
          %vm2376 = vmor %vm2374, %vm2375
          %v2377 = vsel %vm2376, %v2369, %v2373
          %v2378 = vand.u32 2147483647, %v1645
          %vm2379 = vcmp.eq.f32.partialorder %v2378, 8.507059e+37
          %v2380 = vand.u32 %v1645, 2147483648
          %v2381 = vor.u32 1.1754944e-38, %v2380
          %v2382 = vsel %vm2379, %v2381, %v2377
          %v2383 = vmul.f32 1.0, %v2382
          %v2384 = vrcp.pop %v1646
          %v2385 = vmul.f32 %v1646, %v2384
          %v2386 = vsub.f32 1.0, %v2385
          %v2387 = vmul.f32 %v2384, %v2386
          %v2388 = vadd.f32 %v2384, %v2387
          %vm2389 = vweird.f32 %v1646
          %vm2390 = vweird.f32 %v2384
          %vm2391 = vmor %vm2389, %vm2390
          %v2392 = vsel %vm2391, %v2384, %v2388
          %v2393 = vand.u32 2147483647, %v1646
          %vm2394 = vcmp.eq.f32.partialorder %v2393, 8.507059e+37
          %v2395 = vand.u32 %v1646, 2147483648
          %v2396 = vor.u32 1.1754944e-38, %v2395
          %v2397 = vsel %vm2394, %v2396, %v2392
          %v2398 = vmul.f32 1.0, %v2397
          %v2399 = vrcp.pop %v1647
          %v2400 = vmul.f32 %v1647, %v2399
          %v2401 = vsub.f32 1.0, %v2400
          %v2402 = vmul.f32 %v2399, %v2401
          %v2403 = vadd.f32 %v2399, %v2402
          %vm2404 = vweird.f32 %v1647
          %vm2405 = vweird.f32 %v2399
          %vm2406 = vmor %vm2404, %vm2405
          %v2407 = vsel %vm2406, %v2399, %v2403
          %v2408 = vand.u32 2147483647, %v1647
          %vm2409 = vcmp.eq.f32.partialorder %v2408, 8.507059e+37
          %v2410 = vand.u32 %v1647, 2147483648
          %v2411 = vor.u32 1.1754944e-38, %v2410
          %v2412 = vsel %vm2409, %v2411, %v2407
          %v2413 = vmul.f32 1.0, %v2412
          %v2414 = vrcp.pop %v1648
          %v2415 = vmul.f32 %v1648, %v2414
          %v2416 = vsub.f32 1.0, %v2415
          %v2417 = vmul.f32 %v2414, %v2416
          %v2418 = vadd.f32 %v2414, %v2417
          %vm2419 = vweird.f32 %v1648
          %vm2420 = vweird.f32 %v2414
          %vm2421 = vmor %vm2419, %vm2420
          %v2422 = vsel %vm2421, %v2414, %v2418
          %v2423 = vand.u32 2147483647, %v1648
          %vm2424 = vcmp.eq.f32.partialorder %v2423, 8.507059e+37
          %v2425 = vand.u32 %v1648, 2147483648
          %v2426 = vor.u32 1.1754944e-38, %v2425
          %v2427 = vsel %vm2424, %v2426, %v2422
          %v2428 = vmul.f32 1.0, %v2427
          %2429 = vst [vmem:[%s310] sm:$0xff] %v1663
          %2430 = vst [vmem:[%s310 + $0x8] sm:$0xff] %v1678
          %2431 = vst [vmem:[%s310 + $0x10] sm:$0xff] %v1693
          %2432 = vst [vmem:[%s310 + $0x18] sm:$0xff] %v1708
          %2433 = vst [vmem:[%s310 + $0x20] sm:$0xff] %v1723
          %2434 = vst [vmem:[%s310 + $0x28] sm:$0xff] %v1738
          %2435 = vst [vmem:[%s310 + $0x30] sm:$0xff] %v1753
          %2436 = vst [vmem:[%s310 + $0x38] sm:$0xff] %v1768
          %2437 = vst [vmem:[%s310 + $0x40] sm:$0xff] %v1783
          %2438 = vst [vmem:[%s310 + $0x48] sm:$0xff] %v1798
          %2439 = vst [vmem:[%s310 + $0x50] sm:$0xff] %v1813
          %2440 = vst [vmem:[%s310 + $0x58] sm:$0xff] %v1828
          %2441 = vst [vmem:[%s310 + $0x60] sm:$0xff] %v1843
          %2442 = vst [vmem:[%s310 + $0x68] sm:$0xff] %v1858
          %2443 = vst [vmem:[%s310 + $0x70] sm:$0xff] %v1873
          %2444 = vst [vmem:[%s310 + $0x78] sm:$0xff] %v1888
          %2445 = vst [vmem:[%s310 + $0x80] sm:$0xff] %v1903
          %2446 = vst [vmem:[%s310 + $0x88] sm:$0xff] %v1918
          %2447 = vst [vmem:[%s310 + $0x90] sm:$0xff] %v1933
          %2448 = vst [vmem:[%s310 + $0x98] sm:$0xff] %v1948
          %2449 = vst [vmem:[%s310 + $0xa0] sm:$0xff] %v1963
          %2450 = vst [vmem:[%s310 + $0xa8] sm:$0xff] %v1978
          %2451 = vst [vmem:[%s310 + $0xb0] sm:$0xff] %v1993
          %2452 = vst [vmem:[%s310 + $0xb8] sm:$0xff] %v2008
          %2453 = vst [vmem:[%s310 + $0xc0] sm:$0xff] %v2023
          %2454 = vst [vmem:[%s310 + $0xc8] sm:$0xff] %v2038
          %2455 = vst [vmem:[%s310 + $0xd0] sm:$0xff] %v2053
          %2456 = vst [vmem:[%s310 + $0xd8] sm:$0xff] %v2068
          %2457 = vst [vmem:[%s310 + $0xe0] sm:$0xff] %v2083
          %2458 = vst [vmem:[%s310 + $0xe8] sm:$0xff] %v2098
          %2459 = vst [vmem:[%s310 + $0xf0] sm:$0xff] %v2113
          %2460 = vst [vmem:[%s310 + $0xf8] sm:$0xff] %v2128
          %2461 = vst [vmem:[%s310 + $0x100] sm:$0xff] %v2143
          %2462 = vst [vmem:[%s310 + $0x108] sm:$0xff] %v2158
          %2463 = vst [vmem:[%s310 + $0x110] sm:$0xff] %v2173
          %2464 = vst [vmem:[%s310 + $0x118] sm:$0xff] %v2188
          %2465 = vst [vmem:[%s310 + $0x120] sm:$0xff] %v2203
          %2466 = vst [vmem:[%s310 + $0x128] sm:$0xff] %v2218
          %2467 = vst [vmem:[%s310 + $0x130] sm:$0xff] %v2233
          %2468 = vst [vmem:[%s310 + $0x138] sm:$0xff] %v2248
          %2469 = vst [vmem:[%s310 + $0x140] sm:$0xff] %v2263
          %2470 = vst [vmem:[%s310 + $0x148] sm:$0xff] %v2278
          %2471 = vst [vmem:[%s310 + $0x150] sm:$0xff] %v2293
          %2472 = vst [vmem:[%s310 + $0x158] sm:$0xff] %v2308
          %2473 = vst [vmem:[%s310 + $0x160] sm:$0xff] %v2323
          %2474 = vst [vmem:[%s310 + $0x168] sm:$0xff] %v2338
          %2475 = vst [vmem:[%s310 + $0x170] sm:$0xff] %v2353
          %2476 = vst [vmem:[%s310 + $0x178] sm:$0xff] %v2368
          %2477 = vst [vmem:[%s310 + $0x180] sm:$0xff] %v2383
          %2478 = vst [vmem:[%s310 + $0x188] sm:$0xff] %v2398
          %2479 = vst [vmem:[%s310 + $0x190] sm:$0xff] %v2413
          %2480 = vst [vmem:[%s310 + $0x198] sm:$0xff] %v2428
        $region56: #{tpu_custom_call.1} parent=35 // pred_fallthru
          _
        %s2481 = sand.u32 %s155, 1
        %s2482 = scalar_lea.sflag [#allocation5], %s2481
        %s2483 = sand.u32 %s155, 1
        %s2484 = smul.addr %s2483, 416
        %s2485 = scalar_lea.vmem [#allocation9], %s2484
        // Predicated region
        $region57: #{tpu_custom_call.1} parent=35 // pred_check
          %p2486 = pneg %p165
        $region58: #{tpu_custom_call.1} parent=35 // pred_check_branch
          %2488 = sbr.rel (%p2486) target = $region60
        $region59: #{tpu_custom_call.1} parent=35 // pred_region
          %s2489 = smul.u32 26, %s28
          %s2490 = smul.u32 2, %s29
          %2492 = vsyncadd %s2482, 0
          %s2493 = smul.addr %s2489, 4
          %s2494 = sadd.s32 %s2490, %s2493
          %s2495 = smul.addr %s2494, 8
          %s2496 = scalar_lea.hbm %s4, %s2495
          %s2497 = sshll.u32 %s2485, 4
          %s2498 = int_to_ptr.vmem [resolvable:$true] %s2497
          %s2499 = sshll.u32 %s2496, 4
          %s2500 = int_to_ptr.hbm [resolvable:$true] %s2499
          %2505 = dma.vmem_to_hbm [thread:$0]  %s2498, 6656, %s2500, %s2482, 256, 512, 16
        $region60: #{tpu_custom_call.1} parent=35 // pred_fallthru
          _
      $region36: #{tpu_custom_call.1} parent=5 // pred_fallthru
        _
      %p2506 = scmp.le.s32.totalorder 2, %s18
      // Predicated region
      $region61: #{tpu_custom_call.1} parent=5 // pred_check
        %p2507 = pneg %p2506
      $region62: #{tpu_custom_call.1} parent=5 // pred_check_branch
        %2509 = sbr.rel (%p2507) target = $region64
      $region63: #{tpu_custom_call.1} parent=5 // pred_region
        %s2510 = ssub.s32 %s18, 2
        // Predicated region
        $region65: #{tpu_custom_call.1} parent=63 // pred_check
          %p2511 = pneg %p171
        $region66: #{tpu_custom_call.1} parent=63 // pred_check_branch
          %2513 = sbr.rel (%p2511) target = $region68
        $region67: #{tpu_custom_call.1} parent=63 // pred_region
          %s2514 = sand.u32 %s156, 1
          %s2515 = scalar_lea.sflag [#allocation5], %s2514
          %s2516 = sand.u32 %s156, 1
          %s2517 = smul.addr %s2516, 416
          %s2518 = scalar_lea.vmem [#allocation9], %s2517
          %2520 = dma.done %s2515, 6656
        $region68: #{tpu_custom_call.1} parent=63 // pred_fallthru
          _
      $region64: #{tpu_custom_call.1} parent=5 // pred_fallthru
        _
    $region6: #{tpu_custom_call.1} parent=1 // loop_footer
      %s22 = sadd.s32 1, %s18
    $region7: #{tpu_custom_call.1} parent=1 // loop_footer_branch
      %17 = sbr.rel target = $region3
    $region8: #{tpu_custom_call.1} parent=1 // loop_exit
      _
    %2521 = vsyncpa [#allocation4], 1
    %s2522 = scalar_lea.sflag [#allocation4], 1
    %2523 = vsyncpa %s2522, 1
    %2524 = vsyncpa [#allocation7], 1
    %s2525 = scalar_lea.sflag [#allocation7], 1
    %2526 = vsyncpa %s2525, 1
    %2527 = vsyncpa [#allocation5], 1
    %s2528 = scalar_lea.sflag [#allocation5], 1
    %2529 = vsyncpa %s2528, 1

</llo_original>
